<compile_context>
chip_gen: v6e
topology: v6e:2x2x1
jax: 0.10.0
libtpu: 0.0.40
codegen_flags: <defaults>
</compile_context>

<pallas_src>
import jax
import jax.numpy as jnp
from jax.experimental import pallas as pl
from jax.experimental.pallas import tpu as pltpu

LN_EPS = 1e-5                     # PyTorch nn.LayerNorm default eps
_ONEHOT_MAX_VOCAB = 2048          # one-hot MXU gather below this vocab size


def _layer_norm(x, gamma, beta, eps=LN_EPS):
    d = x.shape[-1]
    inv_d = 1.0 / d
    mean = jnp.sum(x, axis=-1, keepdims=True) * inv_d
    cent = x - mean
    var = jnp.sum(cent * cent, axis=-1, keepdims=True) * inv_d
    return cent * jax.lax.rsqrt(var + eps) * gamma + beta


def _vmem_limit(requested_bytes):
    """Clamp a requested scoped-VMEM limit to the chip's physical VMEM."""
    try:
        cap = int(pltpu.get_tpu_info().vmem_capacity_bytes)
    except Exception:
        cap = 64 << 20            # v7x per-TensorCore VMEM (smallest target)
    return int(max(16 << 20, min(int(requested_bytes), cap - (8 << 20))))


# ----------------------------------------------------------------------------
# Embedding: tok_embed[x] + pos_embed[arange(S)], fused with LayerNorm.
# ----------------------------------------------------------------------------
def _embedding_onehot(ids, tok_embed, pos_embed, gamma2, beta2, *, tq, out_dtype):
    B, S = ids.shape
    V, D = tok_embed.shape
    ids3 = ids.reshape(B, S, 1).astype(jnp.int32)

    def kernel(ids_ref, tok_ref, pos_ref, g_ref, b_ref, out_ref):
        idv = ids_ref[...]                                       # (tq, 1) int32
        # One-hot MXU gather from the VMEM-resident token table (exact in f32).
        onehot = (idv == jax.lax.broadcasted_iota(jnp.int32, (idv.shape[0], V), 1)
                  ).astype(jnp.float32)                          # (tq, V)
        rows = jnp.dot(onehot, tok_ref[...],
                       preferred_element_type=jnp.float32)       # (tq, D)
        emb = rows + pos_ref[...].astype(jnp.float32)
        out_ref[...] = _layer_norm(emb, g_ref[...], b_ref[...]).astype(out_ref.dtype)

    grid_spec = pl.GridSpec(
        grid=(B, S // tq),
        in_specs=[
            pl.BlockSpec((None, tq, 1), lambda b, j: (b, j, 0)),   # ids
            pl.BlockSpec((V, D), lambda b, j: (0, 0)),             # resident table
            pl.BlockSpec((tq, D), lambda b, j: (j, 0)),            # pos tile
            pl.BlockSpec((1, D), lambda b, j: (0, 0)),             # gamma
            pl.BlockSpec((1, D), lambda b, j: (0, 0)),             # beta
        ],
        out_specs=pl.BlockSpec((None, tq, D), lambda b, j: (b, j, 0)),
    )
    table_bytes = tok_embed.size * tok_embed.dtype.itemsize
    return pl.pallas_call(
        kernel,
        out_shape=jax.ShapeDtypeStruct((B, S, D), out_dtype),
        grid_spec=grid_spec,
        compiler_params=pltpu.CompilerParams(
            dimension_semantics=("parallel", "parallel"),
            vmem_limit_bytes=_vmem_limit(2 * table_bytes + (16 << 20))),
    )(ids3, tok_embed, pos_embed, gamma2, beta2)


def _embedding_loop_gather(ids, tok_embed, pos_embed, gamma2, beta2, *, tq, out_dtype):
    B, S = ids.shape
    V, D = tok_embed.shape
    flat_ids = ids.reshape(-1).astype(jnp.int32)                  # SMEM prefetch

    def kernel(ids_ref, tok_ref, pos_ref, g_ref, b_ref, out_ref, gath_ref):
        b = pl.program_id(0)
        j = pl.program_id(1)
        base = b * S + j * tq

        def gather_row(t, carry):
            tok_id = ids_ref[base + t]
            gath_ref[pl.ds(t, 1), :] = tok_ref[pl.ds(tok_id, 1), :]
            return carry

        jax.lax.fori_loop(0, tq, gather_row, 0, unroll=min(tq, 8))

        emb = gath_ref[...].astype(jnp.float32) + pos_ref[...].astype(jnp.float32)
        out_ref[...] = _layer_norm(emb, g_ref[...], b_ref[...]).astype(out_ref.dtype)

    grid_spec = pltpu.PrefetchScalarGridSpec(
        num_scalar_prefetch=1,
        grid=(B, S // tq),
        in_specs=[
            pl.BlockSpec((V, D), lambda b, j, ids: (0, 0)),        # resident table
            pl.BlockSpec((tq, D), lambda b, j, ids: (j, 0)),       # pos tile
            pl.BlockSpec((1, D), lambda b, j, ids: (0, 0)),        # gamma
            pl.BlockSpec((1, D), lambda b, j, ids: (0, 0)),        # beta
        ],
        out_specs=pl.BlockSpec((None, tq, D), lambda b, j, ids: (b, j, 0)),
        scratch_shapes=[pltpu.VMEM((tq, D), tok_embed.dtype)],
    )
    table_bytes = tok_embed.size * tok_embed.dtype.itemsize
    # TODO(synk): for vocab tables larger than the per-chip VMEM budget (e.g. a
    # f32 BERT vocab on v7x's 64 MiB VMEM), keep tok_embed at memory_space=pl.ANY
    # and gather rows with a manual double-buffered pltpu.make_async_copy.
    return pl.pallas_call(
        kernel,
        out_shape=jax.ShapeDtypeStruct((B, S, D), out_dtype),
        grid_spec=grid_spec,
        compiler_params=pltpu.CompilerParams(
            dimension_semantics=("parallel", "parallel"),
            vmem_limit_bytes=_vmem_limit(2 * table_bytes + (16 << 20))),
    )(flat_ids, tok_embed, pos_embed, gamma2, beta2)


def embedding_forward(x, tok_embed, pos_embed, gamma, beta, *,
                      out_dtype=jnp.bfloat16, tq=None):
    B, S = x.shape
    V, D = tok_embed.shape
    if tq is None:
        tq = S if S <= 512 else 512
    assert S % tq == 0 and (tq % 8 == 0 or tq == S), (S, tq)
    gamma2 = jnp.asarray(gamma, jnp.float32).reshape(1, D)
    beta2 = jnp.asarray(beta, jnp.float32).reshape(1, D)
    tok_embed = jnp.asarray(tok_embed, jnp.float32)
    pos_embed = jnp.asarray(pos_embed, jnp.float32)
    if V <= _ONEHOT_MAX_VOCAB:
        return _embedding_onehot(x, tok_embed, pos_embed, gamma2, beta2,
                                 tq=tq, out_dtype=out_dtype)
    return _embedding_loop_gather(x, tok_embed, pos_embed, gamma2, beta2,
                                  tq=tq, out_dtype=out_dtype)


# ----------------------------------------------------------------------------
# Fused encoder layer: MHA (pad-masked) + residual + LN, FFN + residual + LN.
# One grid step per batch element.  q_rows < S restricts the query rows that
# are actually computed (keys/values always use the full sequence).
# ----------------------------------------------------------------------------
def encoder_layer_forward(x, pad_mask, lp, *, q_rows=None, out_dtype=jnp.bfloat16):
    B, S, D = x.shape
    H, _, dk = lp["wq"].shape
    dv = lp["wv"].shape[2]
    d_ff = lp["w1"].shape[1]
    if q_rows is None:
        q_rows = S
    scale = 1.0 / (dk ** 0.5)
    nq = H * dk
    nv = H * dv

    # Fused, head-concatenated (lane-dense) projection weights in bf16.
    wq_f = jnp.transpose(lp["wq"], (1, 0, 2)).reshape(D, nq)
    wk_f = jnp.transpose(lp["wk"], (1, 0, 2)).reshape(D, nq)
    wv_f = jnp.transpose(lp["wv"], (1, 0, 2)).reshape(D, nv)
    wqkv = jnp.concatenate([wq_f, wk_f, wv_f], axis=1).astype(jnp.bfloat16)
    bqkv = jnp.concatenate([lp["bq"].reshape(1, nq),
                            lp["bk"].reshape(1, nq),
                            lp["bv"].reshape(1, nv)], axis=1).astype(jnp.float32)
    wo_f = lp["wo"].reshape(nv, D).astype(jnp.bfloat16)
    bo = jnp.asarray(lp["bo"], jnp.float32).reshape(1, D)
    w1 = jnp.asarray(lp["w1"], jnp.bfloat16)
    w2 = jnp.asarray(lp["w2"], jnp.bfloat16)
    g1 = jnp.asarray(lp["attn_ln_g"], jnp.float32).reshape(1, D)
    b1 = jnp.asarray(lp["attn_ln_b"], jnp.float32).reshape(1, D)
    g2 = jnp.asarray(lp["ffn_ln_g"], jnp.float32).reshape(1, D)
    b2 = jnp.asarray(lp["ffn_ln_b"], jnp.float32).reshape(1, D)

    def kernel(x_ref, m_ref, wqkv_ref, bqkv_ref, wo_ref, bo_ref, g1_ref, b1_ref,
               w1_ref, w2_ref, g2_ref, b2_ref, out_ref):
        xb = x_ref[...]                                            # (S, D) bf16
        x32 = xb.astype(jnp.float32)
        # ---- fused QKV projection: one lane-dense bf16 matmul, f32 accum ----
        qkv = jnp.dot(xb, wqkv_ref[...],
                      preferred_element_type=jnp.float32) + bqkv_ref[...]
        pad = m_ref[...] != 0                                      # (1, S) key pad
        ctxs = []
        for h in range(H):                                         # static heads
            q = qkv[0:q_rows, h * dk:(h + 1) * dk].astype(jnp.bfloat16)
            k = qkv[:, nq + h * dk: nq + (h + 1) * dk].astype(jnp.bfloat16)
            v = qkv[:, 2 * nq + h * dv: 2 * nq + (h + 1) * dv].astype(jnp.bfloat16)
            s = jax.lax.dot_general(q, k, (((1,), (1,)), ((), ())),
                                    preferred_element_type=jnp.float32) * scale
            s = jnp.where(pad, -1e9, s)                            # mask pad keys
            s = s - jnp.max(s, axis=-1, keepdims=True)
            p = jnp.exp(s)
            p = p * pl.reciprocal(jnp.sum(p, axis=-1, keepdims=True), approx=True)
            ctxs.append(jnp.dot(p.astype(jnp.bfloat16), v,
                                preferred_element_type=jnp.float32))
        ctx = jnp.concatenate(ctxs, axis=-1)                       # (q_rows, H*dv)
        attn = jnp.dot(ctx.astype(jnp.bfloat16), wo_ref[...],
                       preferred_element_type=jnp.float32) + bo_ref[...]
        y1 = _layer_norm(attn + x32[0:q_rows, :], g1_ref[...], b1_ref[...])
        # ---- position-wise FFN (no biases) + residual + LN ----
        h1 = jnp.maximum(jnp.dot(y1.astype(jnp.bfloat16), w1_ref[...],
                                 preferred_element_type=jnp.float32), 0.0)
        y2 = jnp.dot(h1.astype(jnp.bfloat16), w2_ref[...],
                     preferred_element_type=jnp.float32)
        out_ref[...] = _layer_norm(y2 + y1, g2_ref[...], b2_ref[...]
                                   ).astype(out_ref.dtype)

    grid_spec = pl.GridSpec(
        grid=(B,),
        in_specs=[
            pl.BlockSpec((None, S, D), lambda b: (b, 0, 0)),       # x
            pl.BlockSpec((None, 1, S), lambda b: (b, 0, 0)),       # key-pad mask
            pl.BlockSpec((D, 2 * nq + nv), lambda b: (0, 0)),      # wqkv
            pl.BlockSpec((1, 2 * nq + nv), lambda b: (0, 0)),      # bqkv
            pl.BlockSpec((nv, D), lambda b: (0, 0)),               # wo
            pl.BlockSpec((1, D), lambda b: (0, 0)),                # bo
            pl.BlockSpec((1, D), lambda b: (0, 0)),                # attn_ln gamma
            pl.BlockSpec((1, D), lambda b: (0, 0)),                # attn_ln beta
            pl.BlockSpec((D, d_ff), lambda b: (0, 0)),             # w1
            pl.BlockSpec((d_ff, D), lambda b: (0, 0)),             # w2
            pl.BlockSpec((1, D), lambda b: (0, 0)),                # ffn_ln gamma
            pl.BlockSpec((1, D), lambda b: (0, 0)),                # ffn_ln beta
        ],
        out_specs=pl.BlockSpec((None, q_rows, D), lambda b: (b, 0, 0)),
    )
    weight_bytes = 2 * (wqkv.size + wo_f.size + w1.size + w2.size)   # bf16
    act_bytes = S * D * 4 + S * S * H * 4 + S * d_ff * 4
    return pl.pallas_call(
        kernel,
        out_shape=jax.ShapeDtypeStruct((B, q_rows, D), out_dtype),
        grid_spec=grid_spec,
        compiler_params=pltpu.CompilerParams(
            dimension_semantics=("parallel",),
            vmem_limit_bytes=_vmem_limit(3 * weight_bytes + 2 * act_bytes
                                         + (16 << 20))),
    )(x, pad_mask, wqkv, bqkv, wo_f, bo, g1, b1, w1, w2, g2, b2)


# ----------------------------------------------------------------------------
# Full module forward.
# ----------------------------------------------------------------------------
def bert_forward(params, input_ids):
    B, S = input_ids.shape
    act_dtype = jnp.bfloat16
    out = embedding_forward(input_ids, params["tok_embed"], params["pos_embed"],
                            params["emb_ln_g"], params["emb_ln_b"],
                            out_dtype=act_dtype)
    # get_attn_pad_mask: only the (B,1,S) key-pad vector is materialized; the
    # (S,S) broadcast happens inside the attention kernel.
    pad = (input_ids == 0).astype(jnp.int32).reshape(B, 1, S)
    n_layers = len(params["layers"])
    for i, lp in enumerate(params["layers"]):
        last = i == n_layers - 1
        # Only out[:, 0, :] is returned, so the last layer computes just the
        # first 8-row query tile (keys/values still cover the full sequence).
        q_rows = min(8, S) if last else S
        out = encoder_layer_forward(out, pad, lp, q_rows=q_rows, out_dtype=act_dtype)
    return out[:, 0, :].astype(jnp.float32)                        # h_global


# ----------------------------------------------------------------------------
# Pure-JAX reference (mirrors the PyTorch math, f32 HIGHEST precision).
# ----------------------------------------------------------------------------
def _reference_forward(params, input_ids):
    hi = jax.lax.Precision.HIGHEST
    B, S = input_ids.shape
    emb = params["tok_embed"][input_ids] + params["pos_embed"][jnp.arange(S)][None]
    out = _layer_norm(emb, params["emb_ln_g"], params["emb_ln_b"])
    mask = jnp.broadcast_to((input_ids == 0)[:, None, :], (B, S, S))
    for lp in params["layers"]:
        dk = lp["wq"].shape[2]
        residual = out
        q = jnp.einsum("bsd,hdk->bhsk", out, lp["wq"], precision=hi) + lp["bq"][None]
        k = jnp.einsum("bsd,hdk->bhsk", out, lp["wk"], precision=hi) + lp["bk"][None]
        v = jnp.einsum("bsd,hdv->bhsv", out, lp["wv"], precision=hi) + lp["bv"][None]
        s = jnp.einsum("bhqc,bhkc->bhqk", q, k, precision=hi) / (dk ** 0.5)
        s = jnp.where(mask[:, None, :, :], -1e9, s)
        p = jax.nn.softmax(s, axis=-1)
        ctx = jnp.einsum("bhqk,bhkv->bhqv", p, v, precision=hi)
        proj = jnp.einsum("bhqv,hvd->bqd", ctx, lp["wo"], precision=hi) + lp["bo"]
        out = _layer_norm(proj + residual, lp["attn_ln_g"], lp["attn_ln_b"])
        h1 = jnp.maximum(jnp.einsum("bsd,df->bsf", out, lp["w1"], precision=hi), 0.0)
        y = jnp.einsum("bsf,fd->bsd", h1, lp["w2"], precision=hi)
        out = _layer_norm(y + out, lp["ffn_ln_g"], lp["ffn_ln_b"])
    return out[:, 0, :]


if __name__ == "__main__":
    B, S = 2, 8
    VOCAB, MAXLEN, D_MODEL = 50, 16, 32
    N_LAYERS, N_HEADS, D_K, D_V, D_FF = 2, 4, 8, 8, 64

    kiter = iter(jax.random.split(jax.random.PRNGKey(0), 64))

    def rnd(shape, scale=1.0):
        return scale * jax.random.normal(next(kiter), shape, dtype=jnp.float32)

    input_ids = jax.random.randint(next(kiter), (B, S), 1, VOCAB, dtype=jnp.int32)
    input_ids = input_ids.at[:, -2:].set(0)     # trailing pad tokens -> exercise mask

    params = {
        "tok_embed": rnd((VOCAB, D_MODEL)),
        "pos_embed": rnd((MAXLEN, D_MODEL)),
        "emb_ln_g": 1.0 + 0.1 * rnd((1, D_MODEL)),
        "emb_ln_b": 0.1 * rnd((1, D_MODEL)),
        "layers": [],
    }
    s_in = D_MODEL ** -0.5
    for _ in range(N_LAYERS):
        params["layers"].append({
            "wq": rnd((N_HEADS, D_MODEL, D_K), s_in),
            "bq": rnd((N_HEADS, 1, D_K), 0.1),
            "wk": rnd((N_HEADS, D_MODEL, D_K), s_in),
            "bk": rnd((N_HEADS, 1, D_K), 0.1),
            "wv": rnd((N_HEADS, D_MODEL, D_V), s_in),
            "bv": rnd((N_HEADS, 1, D_V), 0.1),
            "wo": rnd((N_HEADS, D_V, D_MODEL), (N_HEADS * D_V) ** -0.5),
            "bo": rnd((1, D_MODEL), 0.1),
            "attn_ln_g": 1.0 + 0.1 * rnd((1, D_MODEL)),
            "attn_ln_b": 0.1 * rnd((1, D_MODEL)),
            "w1": rnd((D_MODEL, D_FF), s_in),
            "w2": rnd((D_FF, D_MODEL), D_FF ** -0.5),
            "ffn_ln_g": 1.0 + 0.1 * rnd((1, D_MODEL)),
            "ffn_ln_b": 0.1 * rnd((1, D_MODEL)),
        })

    out = jax.jit(bert_forward)(params, input_ids)
    out = jax.block_until_ready(out)

    ref = _reference_forward(params, input_ids)
    assert out.shape == (B, D_MODEL), out.shape
    max_err = float(jnp.max(jnp.abs(out - ref)))
    # bf16 MXU math (f32 accumulation) -> compare against the f32 HIGHEST
    # reference with a bf16-appropriate tolerance.
    assert jnp.allclose(out, ref, atol=5e-2, rtol=5e-2), max_err

    print("KERNEL_OK")
</pallas_src>

<mosaic_0001>
module attributes {stable_mosaic.version = 11 : i64} {
  func.func @kernel(%arg0: i32, %arg1: i32, %arg2: memref<1x8x1xi32, #tpu.memory_space<vmem>>, %arg3: memref<50x32xf32, #tpu.memory_space<vmem>>, %arg4: memref<8x32xf32, #tpu.memory_space<vmem>>, %arg5: memref<1x32xf32, #tpu.memory_space<vmem>>, %arg6: memref<1x32xf32, #tpu.memory_space<vmem>>, %arg7: memref<1x8x32xbf16, #tpu.memory_space<vmem>>) attributes {dimension_semantics = [#tpu.dimension_semantics<parallel>, #tpu.dimension_semantics<parallel>], iteration_bounds = array<i64: 2, 1>, scalar_prefetch = 0 : i64, scratch_operands = 0 : i64, tpu.core_type = #tpu.core_type<tc>, window_params = [{transform_indices = @transform_0, window_bounds = array<i64: 1, 8, 1>}, {pipeline_mode = #tpu.pipeline_mode<synchronous>, transform_indices = @transform_1, window_bounds = array<i64: 50, 32>}, {transform_indices = @transform_2, window_bounds = array<i64: 8, 32>}, {pipeline_mode = #tpu.pipeline_mode<synchronous>, transform_indices = @transform_3, window_bounds = array<i64: 1, 32>}, {pipeline_mode = #tpu.pipeline_mode<synchronous>, transform_indices = @transform_4, window_bounds = array<i64: 1, 32>}, {transform_indices = @transform_5, window_bounds = array<i64: 1, 8, 32>}]} {
    %c0 = arith.constant 0 : index
    %c0_0 = arith.constant 0 : index
    %c0_1 = arith.constant 0 : index
    %0 = vector.load %arg2[%c0, %c0_0, %c0_1] : memref<1x8x1xi32, #tpu.memory_space<vmem>>, vector<1x8x1xi32>
    %1 = vector.shape_cast %0 : vector<1x8x1xi32> to vector<8x1xi32>
    %2 = tpu.iota {dimensions = array<i32: 1>} : vector<8x50xi32>
    %3 = vector.broadcast %1 : vector<8x1xi32> to vector<8x50xi32>
    %4 = arith.cmpi eq, %3, %2 : vector<8x50xi32>
    %5 = arith.extui %4 : vector<8x50xi1> to vector<8x50xi32>
    %6 = arith.sitofp %5 : vector<8x50xi32> to vector<8x50xf32>
    %c0_2 = arith.constant 0 : index
    %c0_3 = arith.constant 0 : index
    %7 = vector.load %arg3[%c0_2, %c0_3] : memref<50x32xf32, #tpu.memory_space<vmem>>, vector<50x32xf32>
    %cst = arith.constant dense<0.000000e+00> : vector<8x32xf32>
    %8 = tpu.matmul %6, %7, %cst {dimension_numbers = #tpu.dot_dimension_numbers<[1], [0], [0], [1], [0, 0, 1, 1], [], []>} : vector<8x50xf32>, vector<50x32xf32>, vector<8x32xf32> -> vector<8x32xf32>
    %c0_4 = arith.constant 0 : index
    %c0_5 = arith.constant 0 : index
    %9 = vector.load %arg4[%c0_4, %c0_5] : memref<8x32xf32, #tpu.memory_space<vmem>>, vector<8x32xf32>
    %10 = arith.addf %8, %9 : vector<8x32xf32>
    %c0_6 = arith.constant 0 : index
    %c0_7 = arith.constant 0 : index
    %11 = vector.load %arg5[%c0_6, %c0_7] : memref<1x32xf32, #tpu.memory_space<vmem>>, vector<1x32xf32>
    %c0_8 = arith.constant 0 : index
    %c0_9 = arith.constant 0 : index
    %12 = vector.load %arg6[%c0_8, %c0_9] : memref<1x32xf32, #tpu.memory_space<vmem>>, vector<1x32xf32>
    %cst_10 = arith.constant dense<0.000000e+00> : vector<8xf32>
    %13 = vector.multi_reduction <add>, %10, %cst_10 [1] : vector<8x32xf32> to vector<8xf32>
    %14 = vector.shape_cast %13 : vector<8xf32> to vector<8x1xf32>
    %cst_11 = arith.constant 3.125000e-02 : f32
    %15 = vector.broadcast %cst_11 : f32 to vector<8x1xf32>
    %16 = arith.mulf %14, %15 : vector<8x1xf32>
    %17 = vector.broadcast %16 : vector<8x1xf32> to vector<8x32xf32>
    %18 = arith.subf %10, %17 : vector<8x32xf32>
    %19 = arith.mulf %18, %18 : vector<8x32xf32>
    %cst_12 = arith.constant dense<0.000000e+00> : vector<8xf32>
    %20 = vector.multi_reduction <add>, %19, %cst_12 [1] : vector<8x32xf32> to vector<8xf32>
    %21 = vector.shape_cast %20 : vector<8xf32> to vector<8x1xf32>
    %cst_13 = arith.constant 3.125000e-02 : f32
    %22 = vector.broadcast %cst_13 : f32 to vector<8x1xf32>
    %23 = arith.mulf %21, %22 : vector<8x1xf32>
    %cst_14 = arith.constant 9.99999974E-6 : f32
    %24 = vector.broadcast %cst_14 : f32 to vector<8x1xf32>
    %25 = arith.addf %23, %24 : vector<8x1xf32>
    %26 = math.rsqrt %25 : vector<8x1xf32>
    %27 = vector.broadcast %26 : vector<8x1xf32> to vector<8x32xf32>
    %28 = arith.mulf %18, %27 : vector<8x32xf32>
    %29 = vector.broadcast %11 : vector<1x32xf32> to vector<8x32xf32>
    %30 = arith.mulf %28, %29 : vector<8x32xf32>
    %31 = vector.broadcast %12 : vector<1x32xf32> to vector<8x32xf32>
    %32 = arith.addf %30, %31 : vector<8x32xf32>
    %33 = arith.truncf %32 : vector<8x32xf32> to vector<8x32xbf16>
    %c0_15 = arith.constant 0 : index
    %c0_16 = arith.constant 0 : index
    %c0_17 = arith.constant 0 : index
    %34 = vector.load %arg7[%c0_15, %c0_16, %c0_17] : memref<1x8x32xbf16, #tpu.memory_space<vmem>>, vector<1x8x32xbf16>
    %35 = vector.shape_cast %34 : vector<1x8x32xbf16> to vector<8x32xbf16>
    %36 = vector.shape_cast %33 : vector<8x32xbf16> to vector<1x8x32xbf16>
    tpu.vector_store %arg7[%c0_15, %c0_16, %c0_17], %36 {strides = array<i32>} : memref<1x8x32xbf16, #tpu.memory_space<vmem>>, vector<1x8x32xbf16>,
    return
  }
  func.func @transform_0(%arg0: i32, %arg1: i32) -> (i32, i32, i32) {
    %c0_i32 = arith.constant 0 : i32
    %c0_i32_0 = arith.constant 0 : i32
    return %arg0, %arg1, %c0_i32 : i32, i32, i32
  }
  func.func @transform_1(%arg0: i32, %arg1: i32) -> (i32, i32) {
    %c0_i32 = arith.constant 0 : i32
    %c0_i32_0 = arith.constant 0 : i32
    %c0_i32_1 = arith.constant 0 : i32
    return %c0_i32, %c0_i32_0 : i32, i32
  }
  func.func @transform_2(%arg0: i32, %arg1: i32) -> (i32, i32) {
    %c0_i32 = arith.constant 0 : i32
    %c0_i32_0 = arith.constant 0 : i32
    return %arg1, %c0_i32 : i32, i32
  }
  func.func @transform_3(%arg0: i32, %arg1: i32) -> (i32, i32) {
    %c0_i32 = arith.constant 0 : i32
    %c0_i32_0 = arith.constant 0 : i32
    %c0_i32_1 = arith.constant 0 : i32
    return %c0_i32, %c0_i32_0 : i32, i32
  }
  func.func @transform_4(%arg0: i32, %arg1: i32) -> (i32, i32) {
    %c0_i32 = arith.constant 0 : i32
    %c0_i32_0 = arith.constant 0 : i32
    %c0_i32_1 = arith.constant 0 : i32
    return %c0_i32, %c0_i32_0 : i32, i32
  }
  func.func @transform_5(%arg0: i32, %arg1: i32) -> (i32, i32, i32) {
    %c0_i32 = arith.constant 0 : i32
    %c0_i32_0 = arith.constant 0 : i32
    return %arg0, %arg1, %c0_i32 : i32, i32, i32
  }
}

module attributes {stable_mosaic.version = 11 : i64} {
  func.func @kernel(%arg0: i32, %arg1: memref<1x8x32xbf16, #tpu.memory_space<vmem>>, %arg2: memref<1x1x8xi32, #tpu.memory_space<vmem>>, %arg3: memref<32x96xbf16, #tpu.memory_space<vmem>>, %arg4: memref<1x96xf32, #tpu.memory_space<vmem>>, %arg5: memref<32x32xbf16, #tpu.memory_space<vmem>>, %arg6: memref<1x32xf32, #tpu.memory_space<vmem>>, %arg7: memref<1x32xf32, #tpu.memory_space<vmem>>, %arg8: memref<1x32xf32, #tpu.memory_space<vmem>>, %arg9: memref<32x64xbf16, #tpu.memory_space<vmem>>, %arg10: memref<64x32xbf16, #tpu.memory_space<vmem>>, %arg11: memref<1x32xf32, #tpu.memory_space<vmem>>, %arg12: memref<1x32xf32, #tpu.memory_space<vmem>>, %arg13: memref<1x8x32xbf16, #tpu.memory_space<vmem>>) attributes {dimension_semantics = [#tpu.dimension_semantics<parallel>], iteration_bounds = array<i64: 2>, scalar_prefetch = 0 : i64, scratch_operands = 0 : i64, tpu.core_type = #tpu.core_type<tc>, window_params = [{transform_indices = @transform_0, window_bounds = array<i64: 1, 8, 32>}, {transform_indices = @transform_1, window_bounds = array<i64: 1, 1, 8>}, {pipeline_mode = #tpu.pipeline_mode<synchronous>, transform_indices = @transform_2, window_bounds = array<i64: 32, 96>}, {pipeline_mode = #tpu.pipeline_mode<synchronous>, transform_indices = @transform_3, window_bounds = array<i64: 1, 96>}, {pipeline_mode = #tpu.pipeline_mode<synchronous>, transform_indices = @transform_4, window_bounds = array<i64: 32, 32>}, {pipeline_mode = #tpu.pipeline_mode<synchronous>, transform_indices = @transform_5, window_bounds = array<i64: 1, 32>}, {pipeline_mode = #tpu.pipeline_mode<synchronous>, transform_indices = @transform_6, window_bounds = array<i64: 1, 32>}, {pipeline_mode = #tpu.pipeline_mode<synchronous>, transform_indices = @transform_7, window_bounds = array<i64: 1, 32>}, {pipeline_mode = #tpu.pipeline_mode<synchronous>, transform_indices = @transform_8, window_bounds = array<i64: 32, 64>}, {pipeline_mode = #tpu.pipeline_mode<synchronous>, transform_indices = @transform_9, window_bounds = array<i64: 64, 32>}, {pipeline_mode = #tpu.pipeline_mode<synchronous>, transform_indices = @transform_10, window_bounds = array<i64: 1, 32>}, {pipeline_mode = #tpu.pipeline_mode<synchronous>, transform_indices = @transform_11, window_bounds = array<i64: 1, 32>}, {transform_indices = @transform_12, window_bounds = array<i64: 1, 8, 32>}]} {
    %c0 = arith.constant 0 : index
    %c0_0 = arith.constant 0 : index
    %c0_1 = arith.constant 0 : index
    %0 = vector.load %arg1[%c0, %c0_0, %c0_1] : memref<1x8x32xbf16, #tpu.memory_space<vmem>>, vector<1x8x32xbf16>
    %1 = vector.shape_cast %0 : vector<1x8x32xbf16> to vector<8x32xbf16>
    %2 = arith.extf %1 : vector<8x32xbf16> to vector<8x32xf32>
    %c0_2 = arith.constant 0 : index
    %c0_3 = arith.constant 0 : index
    %3 = vector.load %arg3[%c0_2, %c0_3] : memref<32x96xbf16, #tpu.memory_space<vmem>>, vector<32x96xbf16>
    %cst = arith.constant dense<0.000000e+00> : vector<8x96xf32>
    %4 = tpu.matmul %1, %3, %cst {dimension_numbers = #tpu.dot_dimension_numbers<[1], [0], [0], [1], [0, 0, 1, 1], [], []>} : vector<8x32xbf16>, vector<32x96xbf16>, vector<8x96xf32> -> vector<8x96xf32>
    %c0_4 = arith.constant 0 : index
    %c0_5 = arith.constant 0 : index
    %5 = vector.load %arg4[%c0_4, %c0_5] : memref<1x96xf32, #tpu.memory_space<vmem>>, vector<1x96xf32>
    %6 = vector.broadcast %5 : vector<1x96xf32> to vector<8x96xf32>
    %7 = arith.addf %4, %6 : vector<8x96xf32>
    %c0_6 = arith.constant 0 : index
    %c0_7 = arith.constant 0 : index
    %c0_8 = arith.constant 0 : index
    %8 = vector.load %arg2[%c0_6, %c0_7, %c0_8] : memref<1x1x8xi32, #tpu.memory_space<vmem>>, vector<1x1x8xi32>
    %9 = vector.shape_cast %8 : vector<1x1x8xi32> to vector<1x8xi32>
    %c0_i32 = arith.constant 0 : i32
    %10 = vector.broadcast %c0_i32 : i32 to vector<1x8xi32>
    %11 = arith.cmpi ne, %9, %10 : vector<1x8xi32>
    %12 = vector.extract_strided_slice %7 {offsets = [0, 0], sizes = [8, 8], strides = [1, 1]} : vector<8x96xf32> to vector<8x8xf32>
    %13 = arith.truncf %12 : vector<8x8xf32> to vector<8x8xbf16>
    %14 = vector.extract_strided_slice %7 {offsets = [0, 32], sizes = [8, 8], strides = [1, 1]} : vector<8x96xf32> to vector<8x8xf32>
    %15 = arith.truncf %14 : vector<8x8xf32> to vector<8x8xbf16>
    %16 = vector.extract_strided_slice %7 {offsets = [0, 64], sizes = [8, 8], strides = [1, 1]} : vector<8x96xf32> to vector<8x8xf32>
    %17 = arith.truncf %16 : vector<8x8xf32> to vector<8x8xbf16>
    %cst_9 = arith.constant dense<0.000000e+00> : vector<8x8xf32>
    %18 = tpu.matmul %13, %15, %cst_9 {dimension_numbers = #tpu.dot_dimension_numbers<[1], [1], [0], [0], [0, 0, 1, 0], [], []>} : vector<8x8xbf16>, vector<8x8xbf16>, vector<8x8xf32> -> vector<8x8xf32>
    %cst_10 = arith.constant 0.353553385 : f32
    %19 = vector.broadcast %cst_10 : f32 to vector<8x8xf32>
    %20 = arith.mulf %18, %19 : vector<8x8xf32>
    %cst_11 = arith.constant -1.000000e+09 : f32
    %21 = vector.shape_cast %11 : vector<1x8xi1> to vector<1x8xi1>
    %22 = vector.broadcast %21 : vector<1x8xi1> to vector<8x8xi1>
    %23 = vector.broadcast %cst_11 : f32 to vector<8x8xf32>
    %24 = arith.select %22, %23, %20 : vector<8x8xi1>, vector<8x8xf32>
    %cst_12 = arith.constant dense<0xFF800000> : vector<8xf32>
    %25 = vector.multi_reduction <maximumf>, %24, %cst_12 [1] : vector<8x8xf32> to vector<8xf32>
    %26 = vector.shape_cast %25 : vector<8xf32> to vector<8x1xf32>
    %27 = vector.broadcast %26 : vector<8x1xf32> to vector<8x8xf32>
    %28 = arith.subf %24, %27 : vector<8x8xf32>
    %29 = math.exp %28 : vector<8x8xf32>
    %cst_13 = arith.constant dense<0.000000e+00> : vector<8xf32>
    %30 = vector.multi_reduction <add>, %29, %cst_13 [1] : vector<8x8xf32> to vector<8xf32>
    %31 = vector.shape_cast %30 : vector<8xf32> to vector<8x1xf32>
    %32 = tpu.reciprocal %31 {approx = true} : vector<8x1xf32> -> vector<8x1xf32>
    %33 = vector.broadcast %32 : vector<8x1xf32> to vector<8x8xf32>
    %34 = arith.mulf %29, %33 : vector<8x8xf32>
    %35 = arith.truncf %34 : vector<8x8xf32> to vector<8x8xbf16>
    %cst_14 = arith.constant dense<0.000000e+00> : vector<8x8xf32>
    %36 = tpu.matmul %35, %17, %cst_14 {dimension_numbers = #tpu.dot_dimension_numbers<[1], [0], [0], [1], [0, 0, 1, 1], [], []>} : vector<8x8xbf16>, vector<8x8xbf16>, vector<8x8xf32> -> vector<8x8xf32>
    %37 = vector.extract_strided_slice %7 {offsets = [0, 8], sizes = [8, 8], strides = [1, 1]} : vector<8x96xf32> to vector<8x8xf32>
    %38 = arith.truncf %37 : vector<8x8xf32> to vector<8x8xbf16>
    %39 = vector.extract_strided_slice %7 {offsets = [0, 40], sizes = [8, 8], strides = [1, 1]} : vector<8x96xf32> to vector<8x8xf32>
    %40 = arith.truncf %39 : vector<8x8xf32> to vector<8x8xbf16>
    %41 = vector.extract_strided_slice %7 {offsets = [0, 72], sizes = [8, 8], strides = [1, 1]} : vector<8x96xf32> to vector<8x8xf32>
    %42 = arith.truncf %41 : vector<8x8xf32> to vector<8x8xbf16>
    %cst_15 = arith.constant dense<0.000000e+00> : vector<8x8xf32>
    %43 = tpu.matmul %38, %40, %cst_15 {dimension_numbers = #tpu.dot_dimension_numbers<[1], [1], [0], [0], [0, 0, 1, 0], [], []>} : vector<8x8xbf16>, vector<8x8xbf16>, vector<8x8xf32> -> vector<8x8xf32>
    %cst_16 = arith.constant 0.353553385 : f32
    %44 = vector.broadcast %cst_16 : f32 to vector<8x8xf32>
    %45 = arith.mulf %43, %44 : vector<8x8xf32>
    %cst_17 = arith.constant -1.000000e+09 : f32
    %46 = vector.shape_cast %11 : vector<1x8xi1> to vector<1x8xi1>
    %47 = vector.broadcast %46 : vector<1x8xi1> to vector<8x8xi1>
    %48 = vector.broadcast %cst_17 : f32 to vector<8x8xf32>
    %49 = arith.select %47, %48, %45 : vector<8x8xi1>, vector<8x8xf32>
    %cst_18 = arith.constant dense<0xFF800000> : vector<8xf32>
    %50 = vector.multi_reduction <maximumf>, %49, %cst_18 [1] : vector<8x8xf32> to vector<8xf32>
    %51 = vector.shape_cast %50 : vector<8xf32> to vector<8x1xf32>
    %52 = vector.broadcast %51 : vector<8x1xf32> to vector<8x8xf32>
    %53 = arith.subf %49, %52 : vector<8x8xf32>
    %54 = math.exp %53 : vector<8x8xf32>
    %cst_19 = arith.constant dense<0.000000e+00> : vector<8xf32>
    %55 = vector.multi_reduction <add>, %54, %cst_19 [1] : vector<8x8xf32> to vector<8xf32>
    %56 = vector.shape_cast %55 : vector<8xf32> to vector<8x1xf32>
    %57 = tpu.reciprocal %56 {approx = true} : vector<8x1xf32> -> vector<8x1xf32>
    %58 = vector.broadcast %57 : vector<8x1xf32> to vector<8x8xf32>
    %59 = arith.mulf %54, %58 : vector<8x8xf32>
    %60 = arith.truncf %59 : vector<8x8xf32> to vector<8x8xbf16>
    %cst_20 = arith.constant dense<0.000000e+00> : vector<8x8xf32>
    %61 = tpu.matmul %60, %42, %cst_20 {dimension_numbers = #tpu.dot_dimension_numbers<[1], [0], [0], [1], [0, 0, 1, 1], [], []>} : vector<8x8xbf16>, vector<8x8xbf16>, vector<8x8xf32> -> vector<8x8xf32>
    %62 = vector.extract_strided_slice %7 {offsets = [0, 16], sizes = [8, 8], strides = [1, 1]} : vector<8x96xf32> to vector<8x8xf32>
    %63 = arith.truncf %62 : vector<8x8xf32> to vector<8x8xbf16>
    %64 = vector.extract_strided_slice %7 {offsets = [0, 48], sizes = [8, 8], strides = [1, 1]} : vector<8x96xf32> to vector<8x8xf32>
    %65 = arith.truncf %64 : vector<8x8xf32> to vector<8x8xbf16>
    %66 = vector.extract_strided_slice %7 {offsets = [0, 80], sizes = [8, 8], strides = [1, 1]} : vector<8x96xf32> to vector<8x8xf32>
    %67 = arith.truncf %66 : vector<8x8xf32> to vector<8x8xbf16>
    %cst_21 = arith.constant dense<0.000000e+00> : vector<8x8xf32>
    %68 = tpu.matmul %63, %65, %cst_21 {dimension_numbers = #tpu.dot_dimension_numbers<[1], [1], [0], [0], [0, 0, 1, 0], [], []>} : vector<8x8xbf16>, vector<8x8xbf16>, vector<8x8xf32> -> vector<8x8xf32>
    %cst_22 = arith.constant 0.353553385 : f32
    %69 = vector.broadcast %cst_22 : f32 to vector<8x8xf32>
    %70 = arith.mulf %68, %69 : vector<8x8xf32>
    %cst_23 = arith.constant -1.000000e+09 : f32
    %71 = vector.shape_cast %11 : vector<1x8xi1> to vector<1x8xi1>
    %72 = vector.broadcast %71 : vector<1x8xi1> to vector<8x8xi1>
    %73 = vector.broadcast %cst_23 : f32 to vector<8x8xf32>
    %74 = arith.select %72, %73, %70 : vector<8x8xi1>, vector<8x8xf32>
    %cst_24 = arith.constant dense<0xFF800000> : vector<8xf32>
    %75 = vector.multi_reduction <maximumf>, %74, %cst_24 [1] : vector<8x8xf32> to vector<8xf32>
    %76 = vector.shape_cast %75 : vector<8xf32> to vector<8x1xf32>
    %77 = vector.broadcast %76 : vector<8x1xf32> to vector<8x8xf32>
    %78 = arith.subf %74, %77 : vector<8x8xf32>
    %79 = math.exp %78 : vector<8x8xf32>
    %cst_25 = arith.constant dense<0.000000e+00> : vector<8xf32>
    %80 = vector.multi_reduction <add>, %79, %cst_25 [1] : vector<8x8xf32> to vector<8xf32>
    %81 = vector.shape_cast %80 : vector<8xf32> to vector<8x1xf32>
    %82 = tpu.reciprocal %81 {approx = true} : vector<8x1xf32> -> vector<8x1xf32>
    %83 = vector.broadcast %82 : vector<8x1xf32> to vector<8x8xf32>
    %84 = arith.mulf %79, %83 : vector<8x8xf32>
    %85 = arith.truncf %84 : vector<8x8xf32> to vector<8x8xbf16>
    %cst_26 = arith.constant dense<0.000000e+00> : vector<8x8xf32>
    %86 = tpu.matmul %85, %67, %cst_26 {dimension_numbers = #tpu.dot_dimension_numbers<[1], [0], [0], [1], [0, 0, 1, 1], [], []>} : vector<8x8xbf16>, vector<8x8xbf16>, vector<8x8xf32> -> vector<8x8xf32>
    %87 = vector.extract_strided_slice %7 {offsets = [0, 24], sizes = [8, 8], strides = [1, 1]} : vector<8x96xf32> to vector<8x8xf32>
    %88 = arith.truncf %87 : vector<8x8xf32> to vector<8x8xbf16>
    %89 = vector.extract_strided_slice %7 {offsets = [0, 56], sizes = [8, 8], strides = [1, 1]} : vector<8x96xf32> to vector<8x8xf32>
    %90 = arith.truncf %89 : vector<8x8xf32> to vector<8x8xbf16>
    %91 = vector.extract_strided_slice %7 {offsets = [0, 88], sizes = [8, 8], strides = [1, 1]} : vector<8x96xf32> to vector<8x8xf32>
    %92 = arith.truncf %91 : vector<8x8xf32> to vector<8x8xbf16>
    %cst_27 = arith.constant dense<0.000000e+00> : vector<8x8xf32>
    %93 = tpu.matmul %88, %90, %cst_27 {dimension_numbers = #tpu.dot_dimension_numbers<[1], [1], [0], [0], [0, 0, 1, 0], [], []>} : vector<8x8xbf16>, vector<8x8xbf16>, vector<8x8xf32> -> vector<8x8xf32>
    %cst_28 = arith.constant 0.353553385 : f32
    %94 = vector.broadcast %cst_28 : f32 to vector<8x8xf32>
    %95 = arith.mulf %93, %94 : vector<8x8xf32>
    %cst_29 = arith.constant -1.000000e+09 : f32
    %96 = vector.shape_cast %11 : vector<1x8xi1> to vector<1x8xi1>
    %97 = vector.broadcast %96 : vector<1x8xi1> to vector<8x8xi1>
    %98 = vector.broadcast %cst_29 : f32 to vector<8x8xf32>
    %99 = arith.select %97, %98, %95 : vector<8x8xi1>, vector<8x8xf32>
    %cst_30 = arith.constant dense<0xFF800000> : vector<8xf32>
    %100 = vector.multi_reduction <maximumf>, %99, %cst_30 [1] : vector<8x8xf32> to vector<8xf32>
    %101 = vector.shape_cast %100 : vector<8xf32> to vector<8x1xf32>
    %102 = vector.broadcast %101 : vector<8x1xf32> to vector<8x8xf32>
    %103 = arith.subf %99, %102 : vector<8x8xf32>
    %104 = math.exp %103 : vector<8x8xf32>
    %cst_31 = arith.constant dense<0.000000e+00> : vector<8xf32>
    %105 = vector.multi_reduction <add>, %104, %cst_31 [1] : vector<8x8xf32> to vector<8xf32>
    %106 = vector.shape_cast %105 : vector<8xf32> to vector<8x1xf32>
    %107 = tpu.reciprocal %106 {approx = true} : vector<8x1xf32> -> vector<8x1xf32>
    %108 = vector.broadcast %107 : vector<8x1xf32> to vector<8x8xf32>
    %109 = arith.mulf %104, %108 : vector<8x8xf32>
    %110 = arith.truncf %109 : vector<8x8xf32> to vector<8x8xbf16>
    %cst_32 = arith.constant dense<0.000000e+00> : vector<8x8xf32>
    %111 = tpu.matmul %110, %92, %cst_32 {dimension_numbers = #tpu.dot_dimension_numbers<[1], [0], [0], [1], [0, 0, 1, 1], [], []>} : vector<8x8xbf16>, vector<8x8xbf16>, vector<8x8xf32> -> vector<8x8xf32>
    %112 = tpu.concatenate %36, %61, %86, %111 in 1 : vector<8x8xf32>, vector<8x8xf32>, vector<8x8xf32>, vector<8x8xf32> -> vector<8x32xf32>
    %113 = arith.truncf %112 : vector<8x32xf32> to vector<8x32xbf16>
    %c0_33 = arith.constant 0 : index
    %c0_34 = arith.constant 0 : index
    %114 = vector.load %arg5[%c0_33, %c0_34] : memref<32x32xbf16, #tpu.memory_space<vmem>>, vector<32x32xbf16>
    %cst_35 = arith.constant dense<0.000000e+00> : vector<8x32xf32>
    %115 = tpu.matmul %113, %114, %cst_35 {dimension_numbers = #tpu.dot_dimension_numbers<[1], [0], [0], [1], [0, 0, 1, 1], [], []>} : vector<8x32xbf16>, vector<32x32xbf16>, vector<8x32xf32> -> vector<8x32xf32>
    %c0_36 = arith.constant 0 : index
    %c0_37 = arith.constant 0 : index
    %116 = vector.load %arg6[%c0_36, %c0_37] : memref<1x32xf32, #tpu.memory_space<vmem>>, vector<1x32xf32>
    %117 = vector.broadcast %116 : vector<1x32xf32> to vector<8x32xf32>
    %118 = arith.addf %115, %117 : vector<8x32xf32>
    %119 = arith.addf %118, %2 : vector<8x32xf32>
    %c0_38 = arith.constant 0 : index
    %c0_39 = arith.constant 0 : index
    %120 = vector.load %arg7[%c0_38, %c0_39] : memref<1x32xf32, #tpu.memory_space<vmem>>, vector<1x32xf32>
    %c0_40 = arith.constant 0 : index
    %c0_41 = arith.constant 0 : index
    %121 = vector.load %arg8[%c0_40, %c0_41] : memref<1x32xf32, #tpu.memory_space<vmem>>, vector<1x32xf32>
    %cst_42 = arith.constant dense<0.000000e+00> : vector<8xf32>
    %122 = vector.multi_reduction <add>, %119, %cst_42 [1] : vector<8x32xf32> to vector<8xf32>
    %123 = vector.shape_cast %122 : vector<8xf32> to vector<8x1xf32>
    %cst_43 = arith.constant 3.125000e-02 : f32
    %124 = vector.broadcast %cst_43 : f32 to vector<8x1xf32>
    %125 = arith.mulf %123, %124 : vector<8x1xf32>
    %126 = vector.broadcast %125 : vector<8x1xf32> to vector<8x32xf32>
    %127 = arith.subf %119, %126 : vector<8x32xf32>
    %128 = arith.mulf %127, %127 : vector<8x32xf32>
    %cst_44 = arith.constant dense<0.000000e+00> : vector<8xf32>
    %129 = vector.multi_reduction <add>, %128, %cst_44 [1] : vector<8x32xf32> to vector<8xf32>
    %130 = vector.shape_cast %129 : vector<8xf32> to vector<8x1xf32>
    %cst_45 = arith.constant 3.125000e-02 : f32
    %131 = vector.broadcast %cst_45 : f32 to vector<8x1xf32>
    %132 = arith.mulf %130, %131 : vector<8x1xf32>
    %cst_46 = arith.constant 9.99999974E-6 : f32
    %133 = vector.broadcast %cst_46 : f32 to vector<8x1xf32>
    %134 = arith.addf %132, %133 : vector<8x1xf32>
    %135 = math.rsqrt %134 : vector<8x1xf32>
    %136 = vector.broadcast %135 : vector<8x1xf32> to vector<8x32xf32>
    %137 = arith.mulf %127, %136 : vector<8x32xf32>
    %138 = vector.broadcast %120 : vector<1x32xf32> to vector<8x32xf32>
    %139 = arith.mulf %137, %138 : vector<8x32xf32>
    %140 = vector.broadcast %121 : vector<1x32xf32> to vector<8x32xf32>
    %141 = arith.addf %139, %140 : vector<8x32xf32>
    %142 = arith.truncf %141 : vector<8x32xf32> to vector<8x32xbf16>
    %c0_47 = arith.constant 0 : index
    %c0_48 = arith.constant 0 : index
    %143 = vector.load %arg9[%c0_47, %c0_48] : memref<32x64xbf16, #tpu.memory_space<vmem>>, vector<32x64xbf16>
    %cst_49 = arith.constant dense<0.000000e+00> : vector<8x64xf32>
    %144 = tpu.matmul %142, %143, %cst_49 {dimension_numbers = #tpu.dot_dimension_numbers<[1], [0], [0], [1], [0, 0, 1, 1], [], []>} : vector<8x32xbf16>, vector<32x64xbf16>, vector<8x64xf32> -> vector<8x64xf32>
    %cst_50 = arith.constant 0.000000e+00 : f32
    %145 = vector.broadcast %cst_50 : f32 to vector<8x64xf32>
    %146 = arith.maximumf %144, %145 : vector<8x64xf32>
    %147 = arith.truncf %146 : vector<8x64xf32> to vector<8x64xbf16>
    %c0_51 = arith.constant 0 : index
    %c0_52 = arith.constant 0 : index
    %148 = vector.load %arg10[%c0_51, %c0_52] : memref<64x32xbf16, #tpu.memory_space<vmem>>, vector<64x32xbf16>
    %cst_53 = arith.constant dense<0.000000e+00> : vector<8x32xf32>
    %149 = tpu.matmul %147, %148, %cst_53 {dimension_numbers = #tpu.dot_dimension_numbers<[1], [0], [0], [1], [0, 0, 1, 1], [], []>} : vector<8x64xbf16>, vector<64x32xbf16>, vector<8x32xf32> -> vector<8x32xf32>
    %150 = arith.addf %149, %141 : vector<8x32xf32>
    %c0_54 = arith.constant 0 : index
    %c0_55 = arith.constant 0 : index
    %151 = vector.load %arg11[%c0_54, %c0_55] : memref<1x32xf32, #tpu.memory_space<vmem>>, vector<1x32xf32>
    %c0_56 = arith.constant 0 : index
    %c0_57 = arith.constant 0 : index
    %152 = vector.load %arg12[%c0_56, %c0_57] : memref<1x32xf32, #tpu.memory_space<vmem>>, vector<1x32xf32>
    %cst_58 = arith.constant dense<0.000000e+00> : vector<8xf32>
    %153 = vector.multi_reduction <add>, %150, %cst_58 [1] : vector<8x32xf32> to vector<8xf32>
    %154 = vector.shape_cast %153 : vector<8xf32> to vector<8x1xf32>
    %cst_59 = arith.constant 3.125000e-02 : f32
    %155 = vector.broadcast %cst_59 : f32 to vector<8x1xf32>
    %156 = arith.mulf %154, %155 : vector<8x1xf32>
    %157 = vector.broadcast %156 : vector<8x1xf32> to vector<8x32xf32>
    %158 = arith.subf %150, %157 : vector<8x32xf32>
    %159 = arith.mulf %158, %158 : vector<8x32xf32>
    %cst_60 = arith.constant dense<0.000000e+00> : vector<8xf32>
    %160 = vector.multi_reduction <add>, %159, %cst_60 [1] : vector<8x32xf32> to vector<8xf32>
    %161 = vector.shape_cast %160 : vector<8xf32> to vector<8x1xf32>
    %cst_61 = arith.constant 3.125000e-02 : f32
    %162 = vector.broadcast %cst_61 : f32 to vector<8x1xf32>
    %163 = arith.mulf %161, %162 : vector<8x1xf32>
    %cst_62 = arith.constant 9.99999974E-6 : f32
    %164 = vector.broadcast %cst_62 : f32 to vector<8x1xf32>
    %165 = arith.addf %163, %164 : vector<8x1xf32>
    %166 = math.rsqrt %165 : vector<8x1xf32>
    %167 = vector.broadcast %166 : vector<8x1xf32> to vector<8x32xf32>
    %168 = arith.mulf %158, %167 : vector<8x32xf32>
    %169 = vector.broadcast %151 : vector<1x32xf32> to vector<8x32xf32>
    %170 = arith.mulf %168, %169 : vector<8x32xf32>
    %171 = vector.broadcast %152 : vector<1x32xf32> to vector<8x32xf32>
    %172 = arith.addf %170, %171 : vector<8x32xf32>
    %173 = arith.truncf %172 : vector<8x32xf32> to vector<8x32xbf16>
    %c0_63 = arith.constant 0 : index
    %c0_64 = arith.constant 0 : index
    %c0_65 = arith.constant 0 : index
    %174 = vector.load %arg13[%c0_63, %c0_64, %c0_65] : memref<1x8x32xbf16, #tpu.memory_space<vmem>>, vector<1x8x32xbf16>
    %175 = vector.shape_cast %174 : vector<1x8x32xbf16> to vector<8x32xbf16>
    %176 = vector.shape_cast %173 : vector<8x32xbf16> to vector<1x8x32xbf16>
    tpu.vector_store %arg13[%c0_63, %c0_64, %c0_65], %176 {strides = array<i32>} : memref<1x8x32xbf16, #tpu.memory_space<vmem>>, vector<1x8x32xbf16>,
    return
  }
  func.func @transform_0(%arg0: i32) -> (i32, i32, i32) {
    %c0_i32 = arith.constant 0 : i32
    %c0_i32_0 = arith.constant 0 : i32
    %c0_i32_1 = arith.constant 0 : i32
    return %arg0, %c0_i32, %c0_i32_0 : i32, i32, i32
  }
  func.func @transform_1(%arg0: i32) -> (i32, i32, i32) {
    %c0_i32 = arith.constant 0 : i32
    %c0_i32_0 = arith.constant 0 : i32
    %c0_i32_1 = arith.constant 0 : i32
    return %arg0, %c0_i32, %c0_i32_0 : i32, i32, i32
  }
  func.func @transform_2(%arg0: i32) -> (i32, i32) {
    %c0_i32 = arith.constant 0 : i32
    %c0_i32_0 = arith.constant 0 : i32
    %c0_i32_1 = arith.constant 0 : i32
    return %c0_i32, %c0_i32_0 : i32, i32
  }
  func.func @transform_3(%arg0: i32) -> (i32, i32) {
    %c0_i32 = arith.constant 0 : i32
    %c0_i32_0 = arith.constant 0 : i32
    %c0_i32_1 = arith.constant 0 : i32
    return %c0_i32, %c0_i32_0 : i32, i32
  }
  func.func @transform_4(%arg0: i32) -> (i32, i32) {
    %c0_i32 = arith.constant 0 : i32
    %c0_i32_0 = arith.constant 0 : i32
    %c0_i32_1 = arith.constant 0 : i32
    return %c0_i32, %c0_i32_0 : i32, i32
  }
  func.func @transform_5(%arg0: i32) -> (i32, i32) {
    %c0_i32 = arith.constant 0 : i32
    %c0_i32_0 = arith.constant 0 : i32
    %c0_i32_1 = arith.constant 0 : i32
    return %c0_i32, %c0_i32_0 : i32, i32
  }
  func.func @transform_6(%arg0: i32) -> (i32, i32) {
    %c0_i32 = arith.constant 0 : i32
    %c0_i32_0 = arith.constant 0 : i32
    %c0_i32_1 = arith.constant 0 : i32
    return %c0_i32, %c0_i32_0 : i32, i32
  }
  func.func @transform_7(%arg0: i32) -> (i32, i32) {
    %c0_i32 = arith.constant 0 : i32
    %c0_i32_0 = arith.constant 0 : i32
    %c0_i32_1 = arith.constant 0 : i32
    return %c0_i32, %c0_i32_0 : i32, i32
  }
  func.func @transform_8(%arg0: i32) -> (i32, i32) {
    %c0_i32 = arith.constant 0 : i32
    %c0_i32_0 = arith.constant 0 : i32
    %c0_i32_1 = arith.constant 0 : i32
    return %c0_i32, %c0_i32_0 : i32, i32
  }
  func.func @transform_9(%arg0: i32) -> (i32, i32) {
    %c0_i32 = arith.constant 0 : i32
    %c0_i32_0 = arith.constant 0 : i32
    %c0_i32_1 = arith.constant 0 : i32
    return %c0_i32, %c0_i32_0 : i32, i32
  }
  func.func @transform_10(%arg0: i32) -> (i32, i32) {
    %c0_i32 = arith.constant 0 : i32
    %c0_i32_0 = arith.constant 0 : i32
    %c0_i32_1 = arith.constant 0 : i32
    return %c0_i32, %c0_i32_0 : i32, i32
  }
  func.func @transform_11(%arg0: i32) -> (i32, i32) {
    %c0_i32 = arith.constant 0 : i32
    %c0_i32_0 = arith.constant 0 : i32
    %c0_i32_1 = arith.constant 0 : i32
    return %c0_i32, %c0_i32_0 : i32, i32
  }
  func.func @transform_12(%arg0: i32) -> (i32, i32, i32) {
    %c0_i32 = arith.constant 0 : i32
    %c0_i32_0 = arith.constant 0 : i32
    %c0_i32_1 = arith.constant 0 : i32
    return %arg0, %c0_i32, %c0_i32_0 : i32, i32, i32
  }
}

</mosaic_0001>

<llo_original>
// kernel: bert_forward.3
$region0: #{bert_forward.3}
  #allocation0 [shape = 'u32[]', space=smem, size = 0x4, offset = 0x4, fixed_abs, tag = 'smem constant byte address 0x4 - core index']
  #allocation1 [shape = 'u32[144,128]{1,0:T(1,128)}', space=vmem, size = 0x12000, scoped, tag = 'internal scratch']
  %s0 = inlined_call_operand.vmem [shape: s32[2,8,1], index: 0, kind: input, shape index: {}]
  %s1 = inlined_call_operand.vmem [shape: f32[50,32], index: 1, kind: input, shape index: {}]
  %s2 = inlined_call_operand.vmem [shape: f32[16,32], index: 2, kind: input, shape index: {}]
  %s3 = inlined_call_operand.vmem [shape: f32[1,32], index: 3, kind: input, shape index: {}]
  %s4 = inlined_call_operand.vmem [shape: f32[1,32], index: 4, kind: input, shape index: {}]
  %s5 = inlined_call_operand.vmem [shape: bf16[2,8,32], index: 5, kind: output, shape index: {}]
  %s6 = sld [smem:[#allocation0]]
  $region53: #{bert_forward.3} parent=0
    _
  %s8 = ssub.s32 1, %s6
  %s9 = scalar_select 0, %s8, %s6
  loop: start=0, step=1, limit=4
  $region2: #{bert_forward.3} parent=0 // loop_pre_header
    _
  $region3: #{bert_forward.3} parent=0 // loop_header
    %s11 = sphi 0, %s15
    %p12 = scmp.ge.s32.totalorder %s11, 4
    %s18 = sphi 0, %s30
    %s19 = sphi 0, %s26
    %s20 = sphi 0, %s18
    %s21 = sphi 0, %s19
    %s22 = sphi 0, %s20
    %s23 = sphi 0, %s21
    %s35 = sphi 0, %s37
    %s38 = sphi 0, %s35
    %s39 = sphi 0, %s38
    %s55 = sphi 0, %s39
    %s59 = sphi 0, %s59
    %s61 = sphi 0, %s59
    %s62 = sphi 0, %s61
    %s76 = sphi 0, %s62
    %s82 = sphi 0, %s84
    %s85 = sphi 0, %s82
    %s86 = sphi 0, %s85
    %s102 = sphi 0, %s86
    %s106 = sphi 0, %s106
    %s108 = sphi 0, %s106
    %s109 = sphi 0, %s108
    %s123 = sphi 0, %s109
    %s127 = sphi 0, %s127
    %s129 = sphi 0, %s127
    %s130 = sphi 0, %s129
    %s144 = sphi 0, %s130
    %s152 = sphi 0, %s154
    %s155 = sphi 0, %s152
    %s156 = sphi 0, %s155
    %s172 = sphi 0, %s156
  $region4: #{bert_forward.3} parent=0 // loop_header_branch
    %14 = sbr.rel (%p12) target = $region8
  $region5: #{bert_forward.3} parent=0 // loop_body
    %s16 = ssub.s32 %s11, 1
    %s17 = ssub.s32 %s11, 2
    %s24 = sadd.s32 1, %s19
    %p25 = scmp.ge.s32.totalorder %s24, 1
    %s26 = scalar_select %p25, 0, %s24
    %s27 = sadd.s32 1, %s18
    %s28 = scalar_select %p25, %s27, %s18
    %p29 = scmp.ge.s32.totalorder %s28, 2
    %s30 = scalar_select %p29, 0, %s28
    %s31 = ssub.s32 %s18, %s30
    %s32 = ssub.s32 %s19, %s26
    %s33 = sor.u32 %s31, %s32
    %p34 = scmp.eq.s32.totalorder %s33, 0
    %s36 = sadd.s32 %s35, 1
    %s37 = scalar_select %p34, %s35, %s36
    %p40 = pneg %p34
    %p41 = scmp.eq.s32.totalorder %s11, 1
    %p42 = por %p40, %p41
    %p43 = scmp.ne.s32.totalorder %s35, %s38
    %p44 = scmp.eq.s32.totalorder %s11, 0
    %p45 = por %p43, %p44
    %p46 = scmp.ne.s32.totalorder %s35, %s38
    %p47 = scmp.eq.s32.totalorder %s16, 1
    %p48 = por %p46, %p47
    %p49 = scmp.ne.s32.totalorder %s38, %s39
    %p50 = scmp.eq.s32.totalorder %s16, 0
    %p51 = por %p49, %p50
    %p52 = scmp.ne.s32.totalorder %s38, %s39
    %p53 = scmp.eq.s32.totalorder %s17, 1
    %p54 = por %p52, %p53
    %p56 = scmp.ne.s32.totalorder %s39, %s55
    %p57 = scmp.eq.s32.totalorder %s17, 0
    %p58 = por %p56, %p57
    %s60 = sadd.s32 %s59, 1
    %p63 = scmp.eq.s32.totalorder %s11, 1
    %p64 = scmp.ne.s32.totalorder %s59, %s61
    %p65 = scmp.eq.s32.totalorder %s11, 0
    %p66 = por %p64, %p65
    %p67 = scmp.ne.s32.totalorder %s59, %s61
    %p68 = scmp.eq.s32.totalorder %s16, 1
    %p69 = por %p67, %p68
    %p70 = scmp.ne.s32.totalorder %s61, %s62
    %p71 = scmp.eq.s32.totalorder %s16, 0
    %p72 = por %p70, %p71
    %p73 = scmp.ne.s32.totalorder %s61, %s62
    %p74 = scmp.eq.s32.totalorder %s17, 1
    %p75 = por %p73, %p74
    %p77 = scmp.ne.s32.totalorder %s62, %s76
    %p78 = scmp.eq.s32.totalorder %s17, 0
    %p79 = por %p77, %p78
    %s80 = ssub.s32 %s19, %s26
    %p81 = scmp.eq.s32.totalorder %s80, 0
    %s83 = sadd.s32 %s82, 1
    %s84 = scalar_select %p81, %s82, %s83
    %p87 = pneg %p81
    %p88 = scmp.eq.s32.totalorder %s11, 1
    %p89 = por %p87, %p88
    %p90 = scmp.ne.s32.totalorder %s82, %s85
    %p91 = scmp.eq.s32.totalorder %s11, 0
    %p92 = por %p90, %p91
    %p93 = scmp.ne.s32.totalorder %s82, %s85
    %p94 = scmp.eq.s32.totalorder %s16, 1
    %p95 = por %p93, %p94
    %p96 = scmp.ne.s32.totalorder %s85, %s86
    %p97 = scmp.eq.s32.totalorder %s16, 0
    %p98 = por %p96, %p97
    %p99 = scmp.ne.s32.totalorder %s85, %s86
    %p100 = scmp.eq.s32.totalorder %s17, 1
    %p101 = por %p99, %p100
    %p103 = scmp.ne.s32.totalorder %s86, %s102
    %p104 = scmp.eq.s32.totalorder %s17, 0
    %p105 = por %p103, %p104
    %s107 = sadd.s32 %s106, 1
    %p110 = scmp.eq.s32.totalorder %s11, 1
    %p111 = scmp.ne.s32.totalorder %s106, %s108
    %p112 = scmp.eq.s32.totalorder %s11, 0
    %p113 = por %p111, %p112
    %p114 = scmp.ne.s32.totalorder %s106, %s108
    %p115 = scmp.eq.s32.totalorder %s16, 1
    %p116 = por %p114, %p115
    %p117 = scmp.ne.s32.totalorder %s108, %s109
    %p118 = scmp.eq.s32.totalorder %s16, 0
    %p119 = por %p117, %p118
    %p120 = scmp.ne.s32.totalorder %s108, %s109
    %p121 = scmp.eq.s32.totalorder %s17, 1
    %p122 = por %p120, %p121
    %p124 = scmp.ne.s32.totalorder %s109, %s123
    %p125 = scmp.eq.s32.totalorder %s17, 0
    %p126 = por %p124, %p125
    %s128 = sadd.s32 %s127, 1
    %p131 = scmp.eq.s32.totalorder %s11, 1
    %p132 = scmp.ne.s32.totalorder %s127, %s129
    %p133 = scmp.eq.s32.totalorder %s11, 0
    %p134 = por %p132, %p133
    %p135 = scmp.ne.s32.totalorder %s127, %s129
    %p136 = scmp.eq.s32.totalorder %s16, 1
    %p137 = por %p135, %p136
    %p138 = scmp.ne.s32.totalorder %s129, %s130
    %p139 = scmp.eq.s32.totalorder %s16, 0
    %p140 = por %p138, %p139
    %p141 = scmp.ne.s32.totalorder %s129, %s130
    %p142 = scmp.eq.s32.totalorder %s17, 1
    %p143 = por %p141, %p142
    %p145 = scmp.ne.s32.totalorder %s130, %s144
    %p146 = scmp.eq.s32.totalorder %s17, 0
    %p147 = por %p145, %p146
    %s148 = ssub.s32 %s18, %s30
    %s149 = ssub.s32 %s19, %s26
    %s150 = sor.u32 %s148, %s149
    %p151 = scmp.eq.s32.totalorder %s150, 0
    %s153 = sadd.s32 %s152, 1
    %s154 = scalar_select %p151, %s152, %s153
    %p157 = pneg %p151
    %p158 = scmp.eq.s32.totalorder %s11, 1
    %p159 = por %p157, %p158
    %p160 = scmp.ne.s32.totalorder %s152, %s155
    %p161 = scmp.eq.s32.totalorder %s11, 0
    %p162 = por %p160, %p161
    %p163 = scmp.ne.s32.totalorder %s152, %s155
    %p164 = scmp.eq.s32.totalorder %s16, 1
    %p165 = por %p163, %p164
    %p166 = scmp.ne.s32.totalorder %s155, %s156
    %p167 = scmp.eq.s32.totalorder %s16, 0
    %p168 = por %p166, %p167
    %p169 = scmp.ne.s32.totalorder %s155, %s156
    %p170 = scmp.eq.s32.totalorder %s17, 1
    %p171 = por %p169, %p170
    %p173 = scmp.ne.s32.totalorder %s156, %s172
    %p174 = scmp.eq.s32.totalorder %s17, 0
    %p175 = por %p173, %p174
    %p176 = scmp.le.s32.totalorder 1, %s11
    %p177 = scmp.lt.s32.totalorder %s11, 3
    %p178 = pnand %p176, %p177
    %p179 = pneg %p178
    // Predicated region
    $region9: #{bert_forward.3} parent=5 // pred_check
      _
    $region10: #{bert_forward.3} parent=5 // pred_check_branch
      %181 = sbr.rel (%p178) target = $region12
    $region11: #{bert_forward.3} parent=5 // pred_region
      %s182 = ssub.s32 %s11, 1
      // Predicated region
      $region13: #{bert_forward.3} parent=11 // pred_check
        %p183 = pneg %p72
      $region14: #{bert_forward.3} parent=11 // pred_check_branch
        %185 = sbr.rel (%p183) target = $region16
      $region15: #{bert_forward.3} parent=11 // pred_region
        _
      $region16: #{bert_forward.3} parent=11 // pred_fallthru
        _
      // Predicated region
      $region17: #{bert_forward.3} parent=11 // pred_check
        %p186 = pneg %p98
      $region18: #{bert_forward.3} parent=11 // pred_check_branch
        %188 = sbr.rel (%p186) target = $region20
      $region19: #{bert_forward.3} parent=11 // pred_region
        %p189 = scmp.lt.s32.totalorder %s21, 1
        %s190 = scalar_select %p189, %s21, 1
        %s191 = smul.addr %s190, 8
        %s192 = scalar_lea.vmem %s2, %s191
      $region20: #{bert_forward.3} parent=11 // pred_fallthru
        _
      // Predicated region
      $region21: #{bert_forward.3} parent=11 // pred_check
        %p193 = pneg %p119
      $region22: #{bert_forward.3} parent=11 // pred_check_branch
        %195 = sbr.rel (%p193) target = $region24
      $region23: #{bert_forward.3} parent=11 // pred_region
        _
      $region24: #{bert_forward.3} parent=11 // pred_fallthru
        _
      // Predicated region
      $region25: #{bert_forward.3} parent=11 // pred_check
        %p196 = pneg %p140
      $region26: #{bert_forward.3} parent=11 // pred_check_branch
        %198 = sbr.rel (%p196) target = $region28
      $region27: #{bert_forward.3} parent=11 // pred_region
        _
      $region28: #{bert_forward.3} parent=11 // pred_fallthru
        _
    $region12: #{bert_forward.3} parent=5 // pred_fallthru
      _
    %p199 = scmp.lt.s32.totalorder %s11, 2
    // Predicated region
    $region29: #{bert_forward.3} parent=5 // pred_check
      %p200 = pneg %p199
    $region30: #{bert_forward.3} parent=5 // pred_check_branch
      %202 = sbr.rel (%p200) target = $region32
    $region31: #{bert_forward.3} parent=5 // pred_region
      // Predicated region
      $region33: #{bert_forward.3} parent=31 // pred_check
        %p203 = pneg %p45
      $region34: #{bert_forward.3} parent=31 // pred_check_branch
        %205 = sbr.rel (%p203) target = $region36
      $region35: #{bert_forward.3} parent=31 // pred_region
        %p206 = scmp.lt.s32.totalorder %s18, 1
        %s207 = scalar_select %p206, %s18, 1
        %p208 = scmp.lt.s32.totalorder %s19, 0
        %s209 = scalar_select %p208, %s19, 0
        %s210 = sadd.s32 %s209, %s207
        %s211 = smul.addr %s210, 8
        %s212 = scalar_lea.vmem %s0, %s211
      $region36: #{bert_forward.3} parent=31 // pred_fallthru
        _
    $region32: #{bert_forward.3} parent=5 // pred_fallthru
      _
    %p213 = scmp.le.s32.totalorder 1, %s11
    %p214 = scmp.lt.s32.totalorder %s11, 3
    %p215 = pnand %p213, %p214
    %p216 = pneg %p215
    // Predicated region
    $region37: #{bert_forward.3} parent=5 // pred_check
      _
    $region38: #{bert_forward.3} parent=5 // pred_check_branch
      %218 = sbr.rel (%p215) target = $region40
    $region39: #{bert_forward.3} parent=5 // pred_region
      %s219 = ssub.s32 %s11, 1
      %p220 = scmp.lt.s32.totalorder %s20, 1
      %s221 = scalar_select %p220, %s20, 1
      %p222 = scmp.lt.s32.totalorder %s21, 0
      %s223 = scalar_select %p222, %s21, 0
      %s224 = sadd.s32 %s223, %s221
      %s225 = smul.addr %s224, 8
      %s226 = scalar_lea.vmem %s0, %s225
      %p227 = pneg %p51
      %p228 = pneg %p48
      %p229 = pneg %p72
      %p230 = pneg %p69
      %p231 = scmp.lt.s32.totalorder %s21, 1
      %s232 = scalar_select %p231, %s21, 1
      %s233 = smul.addr %s232, 8
      %s234 = scalar_lea.vmem %s2, %s233
      %p235 = pneg %p98
      %p236 = pneg %p95
      %p237 = pneg %p119
      %p238 = pneg %p116
      %p239 = pneg %p140
      %p240 = pneg %p137
      %p241 = pneg %p168
      %p242 = pneg %p165
      %p243 = scmp.lt.s32.totalorder %s20, 1
      %s244 = scalar_select %p243, %s20, 1
      %p245 = scmp.lt.s32.totalorder %s21, 0
      %s246 = scalar_select %p245, %s21, 0
      %s247 = sadd.s32 %s246, %s244
      %s248 = smul.addr %s247, 4
      %s249 = scalar_lea.vmem %s5, %s248
      %p250 = scmp.lt.s32.totalorder %s20, 1
      %s251 = scalar_select %p250, %s20, 1
      %p252 = scmp.lt.s32.totalorder %s21, 0
      %s253 = scalar_select %p252, %s21, 0
      %s254 = sadd.s32 %s253, %s251
      %s255 = smul.addr %s254, 8
      %s256 = scalar_lea.vmem %s0, %s255
      %p257 = scmp.lt.s32.totalorder %s21, 1
      %s258 = scalar_select %p257, %s21, 1
      %s259 = smul.addr %s258, 8
      %s260 = scalar_lea.vmem %s2, %s259
      %p261 = scmp.lt.s32.totalorder %s20, 1
      %s262 = scalar_select %p261, %s20, 1
      %p263 = scmp.lt.s32.totalorder %s21, 0
      %s264 = scalar_select %p263, %s21, 0
      %s265 = sadd.s32 %s264, %s262
      %s266 = smul.addr %s265, 4
      %s267 = scalar_lea.vmem %s5, %s266
      %v268 = vld [vmem:[%s256] sm:$0xff]
      %v269 = vlaneseq
      %v270 = vand.u32 %v269, 127
      %271 = vset.pattern.permute.xlu0 0
      %272 = vperm.xlu0 %271, %v268
      %v273 = vpop.permute.xlu0 %272
      %vm274 = vcmp.eq.s32.totalorder %v273, %v270
      %v275 = vsel %vm274, 1, 0
      %v276 = vcvt.s32.f32 %v275
      %v277 = vld [vmem:[%s1] sm:$0xff]
      %v278 = vld [vmem:[%s1 + $0x8] sm:$0xff]
      %v279 = vld [vmem:[%s1 + $0x10] sm:$0xff]
      %v280 = vld [vmem:[%s1 + $0x18] sm:$0xff]
      %v281 = vld [vmem:[%s1 + $0x20] sm:$0xff]
      %v282 = vld [vmem:[%s1 + $0x28] sm:$0xff]
      %v283 = vld [vmem:[%s1 + $0x30] sm:$0x3]
      %v284 = vld [vmem:[%s260] sm:$0xff]
      %vm285 = vcmask 408576
      %v287 = vsel %vm285, %v276, 0
      %vm289 = vcmask 1041408
      %v291 = vsel %vm289, %v283, 0
      %293 = vmatprep.subr.mxu0 0.0
      %294 = vmatpush1.msra.mxu0 0.0
      %295 = vmatprep.subr.mxu0 0.0
      %296 = vmatpush1.msra.mxu0 0.0
      %297 = vmatprep.subr.mxu0 0.0
      %298 = vmatpush1.msra.mxu0 0.0
      %299 = vmatprep.subr.mxu0 0.0
      %300 = vmatpush1.msra.mxu0 0.0
      %301 = vmatprep.subr.mxu0 0.0
      %302 = vmatpush1.msra.mxu0 0.0
      %303 = vmatprep.subr.mxu0 0.0
      %304 = vmatpush1.msra.mxu0 0.0
      %305 = vmatprep.subr.mxu0 0.0
      %306 = vmatpush1.msra.mxu0 0.0
      %307 = vmatprep.subr.mxu0 0.0
      %308 = vmatpush1.msra.mxu0 0.0
      %309 = vmatprep.subr.mxu0 0.0
      %310 = vmatpush1.msra.mxu0 0.0
      %311 = vmatprep.subr.mxu0 0.0
      %312 = vmatpush1.msra.mxu0 %v291
      %313 = vmatprep.subr.mxu0 0.0
      %314 = vmatpush1.msra.mxu0 %v282
      %315 = vmatprep.subr.mxu0 0.0
      %316 = vmatpush1.msra.mxu0 %v281
      %317 = vmatprep.subr.mxu0 0.0
      %318 = vmatpush1.msra.mxu0 %v280
      %319 = vmatprep.subr.mxu0 0.0
      %320 = vmatpush1.msra.mxu0 %v279
      %321 = vmatprep.subr.mxu0 0.0
      %322 = vmatpush1.msra.mxu0 %v278
      %323 = vmatprep.subr.mxu0 0.0
      %324 = vmatpush1.msra.mxu0 %v277
      %325 = vmatprep.subr.mxu0 0.0
      %326 = vmatpush2.msra.mxu0 0.0
      %327 = vmatprep.subr.mxu0 0.0
      %328 = vmatpush2.msra.mxu0 0.0
      %329 = vmatprep.subr.mxu0 0.0
      %330 = vmatpush2.msra.mxu0 0.0
      %331 = vmatprep.subr.mxu0 0.0
      %332 = vmatpush2.msra.mxu0 0.0
      %333 = vmatprep.subr.mxu0 0.0
      %334 = vmatpush2.msra.mxu0 0.0
      %335 = vmatprep.subr.mxu0 0.0
      %336 = vmatpush2.msra.mxu0 0.0
      %337 = vmatprep.subr.mxu0 0.0
      %338 = vmatpush2.msra.mxu0 0.0
      %339 = vmatprep.subr.mxu0 0.0
      %340 = vmatpush2.msra.mxu0 0.0
      %341 = vmatprep.subr.mxu0 0.0
      %342 = vmatpush2.msra.mxu0 0.0
      %343 = vmatprep.subr.mxu0 0.0
      %344 = vmatpush2.msra.mxu0 0.0
      %345 = vmatprep.subr.mxu0 0.0
      %346 = vmatpush2.msra.mxu0 0.0
      %347 = vmatprep.subr.mxu0 0.0
      %348 = vmatpush2.msra.mxu0 0.0
      %349 = vmatprep.subr.mxu0 0.0
      %350 = vmatpush2.msra.mxu0 0.0
      %351 = vmatprep.subr.mxu0 0.0
      %352 = vmatpush2.msra.mxu0 0.0
      %353 = vmatprep.subr.mxu0 0.0
      %354 = vmatpush2.msra.mxu0 0.0
      %355 = vmatprep.subr.mxu0 0.0
      %356 = vmatpush2.msra.mxu0 0.0
      %357 = vmatprep.mubr.f32.mxu0 0.0
      %358 = vmatmul.mubr.f32.gmra.mxu0 %v287
      %v359 = vpop.f32.mrf.mxu0
      %v360 = vadd.f32 %v284, %v359
      %v361 = vpop.f32.mrf.mxu0
      %362 = vdwg.mxu0
      %v363 = vld [vmem:[%s3] sm:$0x1]
      %v364 = vld [vmem:[%s4] sm:$0x1]
      %vm365 = vcmask 261120
      %v366 = vsel %vm365, %v360, 0.0
      %367 = vadd.xlane.f32.xlu0 %v366
      %v368 = vpop.xlane.xlu0 %367
      %v369 = vmul.f32 %v368, 0.03125
      %v370 = vsub.f32 %v360, %v369
      %v371 = vmul.f32 %v370, %v370
      %v372 = vsel %vm365, %v371, 0.0
      %373 = vadd.xlane.f32.xlu0 %v372
      %v374 = vpop.xlane.xlu0 %373
      %v375 = vmul.f32 %v374, 0.03125
      %v376 = vadd.f32 %v375, 1e-05
      %v377 = vrsqrt.pop %v376
      %v378 = vmul.f32 %v370, %v377
      %v380 = vlaneseq
      %v381 = vshrl.u32 %v380, 7
      %v382 = vsub.s32 0, %v381
      %v383 = vrot.slane %v363, %v382
      %v385 = vmul.f32 %v378, %v383
      %v387 = vlaneseq
      %v388 = vshrl.u32 %v387, 7
      %v389 = vsub.s32 0, %v388
      %v390 = vrot.slane %v364, %v389
      %v392 = vadd.f32 %v385, %v390
      %v393 = vpack.c.bf16 %v392, %v392
      %vm394 = vcmask 257024
      %395 = vst.msk [vmem:[%s267] sm:$0xf] %vm394, %v393
      %p396 = scmp.lt.s32.totalorder %s20, 1
      %s397 = scalar_select %p396, %s20, 1
      %p398 = scmp.lt.s32.totalorder %s21, 0
      %s399 = scalar_select %p398, %s21, 0
      %s400 = sadd.s32 %s399, %s397
      %s401 = smul.addr %s400, 4
      %s402 = scalar_lea.vmem %s5, %s401
      // Predicated region
      $region41: #{bert_forward.3} parent=39 // pred_check
        %p403 = pneg %p165
      $region42: #{bert_forward.3} parent=39 // pred_check_branch
        %405 = sbr.rel (%p403) target = $region44
      $region43: #{bert_forward.3} parent=39 // pred_region
        _
      $region44: #{bert_forward.3} parent=39 // pred_fallthru
        _
    $region40: #{bert_forward.3} parent=5 // pred_fallthru
      _
    %p406 = scmp.le.s32.totalorder 2, %s11
    // Predicated region
    $region45: #{bert_forward.3} parent=5 // pred_check
      %p407 = pneg %p406
    $region46: #{bert_forward.3} parent=5 // pred_check_branch
      %409 = sbr.rel (%p407) target = $region48
    $region47: #{bert_forward.3} parent=5 // pred_region
      %s410 = ssub.s32 %s11, 2
      // Predicated region
      $region49: #{bert_forward.3} parent=47 // pred_check
        %p411 = pneg %p171
      $region50: #{bert_forward.3} parent=47 // pred_check_branch
        %413 = sbr.rel (%p411) target = $region52
      $region51: #{bert_forward.3} parent=47 // pred_region
        %p414 = scmp.lt.s32.totalorder %s22, 1
        %s415 = scalar_select %p414, %s22, 1
        %p416 = scmp.lt.s32.totalorder %s23, 0
        %s417 = scalar_select %p416, %s23, 0
        %s418 = sadd.s32 %s417, %s415
        %s419 = smul.addr %s418, 4
        %s420 = scalar_lea.vmem %s5, %s419
      $region52: #{bert_forward.3} parent=47 // pred_fallthru
        _
    $region48: #{bert_forward.3} parent=5 // pred_fallthru
      _
  $region6: #{bert_forward.3} parent=0 // loop_footer
    %s15 = sadd.s32 1, %s11
  $region7: #{bert_forward.3} parent=0 // loop_footer_branch
    %10 = sbr.rel target = $region3
  $region8: #{bert_forward.3} parent=0 // loop_exit
    _

// kernel: bert_forward.4
$region0: #{bert_forward.4}
  #allocation0 [shape = 'u32[]', space=smem, size = 0x4, offset = 0x4, fixed_abs, tag = 'smem constant byte address 0x4 - core index']
  #allocation1 [shape = 'u32[144,128]{1,0:T(1,128)}', space=vmem, size = 0x12000, scoped, tag = 'internal scratch']
  %s0 = inlined_call_operand.vmem [shape: bf16[2,8,32], index: 0, kind: input, shape index: {}]
  %s1 = inlined_call_operand.vmem [shape: s32[2,1,8], index: 1, kind: input, shape index: {}]
  %s2 = inlined_call_operand.vmem [shape: bf16[32,96], index: 2, kind: input, shape index: {}]
  %s3 = inlined_call_operand.vmem [shape: f32[1,96], index: 3, kind: input, shape index: {}]
  %s4 = inlined_call_operand.vmem [shape: bf16[32,32], index: 4, kind: input, shape index: {}]
  %s5 = inlined_call_operand.vmem [shape: f32[1,32], index: 5, kind: input, shape index: {}]
  %s6 = inlined_call_operand.vmem [shape: f32[1,32], index: 6, kind: input, shape index: {}]
  %s7 = inlined_call_operand.vmem [shape: f32[1,32], index: 7, kind: input, shape index: {}]
  %s8 = inlined_call_operand.vmem [shape: bf16[32,64], index: 8, kind: input, shape index: {}]
  %s9 = inlined_call_operand.vmem [shape: bf16[64,32], index: 9, kind: input, shape index: {}]
  %s10 = inlined_call_operand.vmem [shape: f32[1,32], index: 10, kind: input, shape index: {}]
  %s11 = inlined_call_operand.vmem [shape: f32[1,32], index: 11, kind: input, shape index: {}]
  %s12 = inlined_call_operand.vmem [shape: bf16[2,8,32], index: 12, kind: output, shape index: {}]
  %s13 = sld [smem:[#allocation0]]
  $region81: #{bert_forward.4} parent=0
    _
  %s15 = ssub.s32 1, %s13
  %s16 = scalar_select 0, %s15, %s13
  loop: start=0, step=1, limit=4
  $region2: #{bert_forward.4} parent=0 // loop_pre_header
    _
  $region3: #{bert_forward.4} parent=0 // loop_header
    %s18 = sphi 0, %s22
    %p19 = scmp.ge.s32.totalorder %s18, 4
    %s28 = sphi 0, %s30
    %s31 = sphi 0, %s28
    %s32 = sphi 0, %s31
    %s48 = sphi 0, %s32
    %s54 = sphi 0, %s56
    %s57 = sphi 0, %s54
    %s58 = sphi 0, %s57
    %s74 = sphi 0, %s58
    %s78 = sphi 0, %s78
    %s80 = sphi 0, %s78
    %s81 = sphi 0, %s80
    %s95 = sphi 0, %s81
    %s99 = sphi 0, %s99
    %s101 = sphi 0, %s99
    %s102 = sphi 0, %s101
    %s116 = sphi 0, %s102
    %s120 = sphi 0, %s120
    %s122 = sphi 0, %s120
    %s123 = sphi 0, %s122
    %s137 = sphi 0, %s123
    %s141 = sphi 0, %s141
    %s143 = sphi 0, %s141
    %s144 = sphi 0, %s143
    %s158 = sphi 0, %s144
    %s162 = sphi 0, %s162
    %s164 = sphi 0, %s162
    %s165 = sphi 0, %s164
    %s179 = sphi 0, %s165
    %s183 = sphi 0, %s183
    %s185 = sphi 0, %s183
    %s186 = sphi 0, %s185
    %s200 = sphi 0, %s186
    %s204 = sphi 0, %s204
    %s206 = sphi 0, %s204
    %s207 = sphi 0, %s206
    %s221 = sphi 0, %s207
    %s225 = sphi 0, %s225
    %s227 = sphi 0, %s225
    %s228 = sphi 0, %s227
    %s242 = sphi 0, %s228
    %s246 = sphi 0, %s246
    %s248 = sphi 0, %s246
    %s249 = sphi 0, %s248
    %s263 = sphi 0, %s249
    %s267 = sphi 0, %s267
    %s269 = sphi 0, %s267
    %s270 = sphi 0, %s269
    %s284 = sphi 0, %s270
    %s290 = sphi 0, %s292
    %s293 = sphi 0, %s290
    %s294 = sphi 0, %s293
    %s310 = sphi 0, %s294
  $region4: #{bert_forward.4} parent=0 // loop_header_branch
    %21 = sbr.rel (%p19) target = $region8
  $region5: #{bert_forward.4} parent=0 // loop_body
    %s23 = ssub.s32 %s18, 1
    %s24 = ssub.s32 %s18, 2
    %s25 = sadd.s32 %s18, 1
    %s26 = ssub.s32 %s18, %s25
    %p27 = scmp.eq.s32.totalorder %s26, 0
    %s29 = sadd.s32 %s28, 1
    %s30 = scalar_select %p27, %s28, %s29
    %p33 = pneg %p27
    %p34 = scmp.eq.s32.totalorder %s18, 1
    %p35 = por %p33, %p34
    %p36 = scmp.ne.s32.totalorder %s28, %s31
    %p37 = scmp.eq.s32.totalorder %s18, 0
    %p38 = por %p36, %p37
    %p39 = scmp.ne.s32.totalorder %s28, %s31
    %p40 = scmp.eq.s32.totalorder %s23, 1
    %p41 = por %p39, %p40
    %p42 = scmp.ne.s32.totalorder %s31, %s32
    %p43 = scmp.eq.s32.totalorder %s23, 0
    %p44 = por %p42, %p43
    %p45 = scmp.ne.s32.totalorder %s31, %s32
    %p46 = scmp.eq.s32.totalorder %s24, 1
    %p47 = por %p45, %p46
    %p49 = scmp.ne.s32.totalorder %s32, %s48
    %p50 = scmp.eq.s32.totalorder %s24, 0
    %p51 = por %p49, %p50
    %s52 = ssub.s32 %s18, %s25
    %p53 = scmp.eq.s32.totalorder %s52, 0
    %s55 = sadd.s32 %s54, 1
    %s56 = scalar_select %p53, %s54, %s55
    %p59 = pneg %p53
    %p60 = scmp.eq.s32.totalorder %s18, 1
    %p61 = por %p59, %p60
    %p62 = scmp.ne.s32.totalorder %s54, %s57
    %p63 = scmp.eq.s32.totalorder %s18, 0
    %p64 = por %p62, %p63
    %p65 = scmp.ne.s32.totalorder %s54, %s57
    %p66 = scmp.eq.s32.totalorder %s23, 1
    %p67 = por %p65, %p66
    %p68 = scmp.ne.s32.totalorder %s57, %s58
    %p69 = scmp.eq.s32.totalorder %s23, 0
    %p70 = por %p68, %p69
    %p71 = scmp.ne.s32.totalorder %s57, %s58
    %p72 = scmp.eq.s32.totalorder %s24, 1
    %p73 = por %p71, %p72
    %p75 = scmp.ne.s32.totalorder %s58, %s74
    %p76 = scmp.eq.s32.totalorder %s24, 0
    %p77 = por %p75, %p76
    %s79 = sadd.s32 %s78, 1
    %p82 = scmp.eq.s32.totalorder %s18, 1
    %p83 = scmp.ne.s32.totalorder %s78, %s80
    %p84 = scmp.eq.s32.totalorder %s18, 0
    %p85 = por %p83, %p84
    %p86 = scmp.ne.s32.totalorder %s78, %s80
    %p87 = scmp.eq.s32.totalorder %s23, 1
    %p88 = por %p86, %p87
    %p89 = scmp.ne.s32.totalorder %s80, %s81
    %p90 = scmp.eq.s32.totalorder %s23, 0
    %p91 = por %p89, %p90
    %p92 = scmp.ne.s32.totalorder %s80, %s81
    %p93 = scmp.eq.s32.totalorder %s24, 1
    %p94 = por %p92, %p93
    %p96 = scmp.ne.s32.totalorder %s81, %s95
    %p97 = scmp.eq.s32.totalorder %s24, 0
    %p98 = por %p96, %p97
    %s100 = sadd.s32 %s99, 1
    %p103 = scmp.eq.s32.totalorder %s18, 1
    %p104 = scmp.ne.s32.totalorder %s99, %s101
    %p105 = scmp.eq.s32.totalorder %s18, 0
    %p106 = por %p104, %p105
    %p107 = scmp.ne.s32.totalorder %s99, %s101
    %p108 = scmp.eq.s32.totalorder %s23, 1
    %p109 = por %p107, %p108
    %p110 = scmp.ne.s32.totalorder %s101, %s102
    %p111 = scmp.eq.s32.totalorder %s23, 0
    %p112 = por %p110, %p111
    %p113 = scmp.ne.s32.totalorder %s101, %s102
    %p114 = scmp.eq.s32.totalorder %s24, 1
    %p115 = por %p113, %p114
    %p117 = scmp.ne.s32.totalorder %s102, %s116
    %p118 = scmp.eq.s32.totalorder %s24, 0
    %p119 = por %p117, %p118
    %s121 = sadd.s32 %s120, 1
    %p124 = scmp.eq.s32.totalorder %s18, 1
    %p125 = scmp.ne.s32.totalorder %s120, %s122
    %p126 = scmp.eq.s32.totalorder %s18, 0
    %p127 = por %p125, %p126
    %p128 = scmp.ne.s32.totalorder %s120, %s122
    %p129 = scmp.eq.s32.totalorder %s23, 1
    %p130 = por %p128, %p129
    %p131 = scmp.ne.s32.totalorder %s122, %s123
    %p132 = scmp.eq.s32.totalorder %s23, 0
    %p133 = por %p131, %p132
    %p134 = scmp.ne.s32.totalorder %s122, %s123
    %p135 = scmp.eq.s32.totalorder %s24, 1
    %p136 = por %p134, %p135
    %p138 = scmp.ne.s32.totalorder %s123, %s137
    %p139 = scmp.eq.s32.totalorder %s24, 0
    %p140 = por %p138, %p139
    %s142 = sadd.s32 %s141, 1
    %p145 = scmp.eq.s32.totalorder %s18, 1
    %p146 = scmp.ne.s32.totalorder %s141, %s143
    %p147 = scmp.eq.s32.totalorder %s18, 0
    %p148 = por %p146, %p147
    %p149 = scmp.ne.s32.totalorder %s141, %s143
    %p150 = scmp.eq.s32.totalorder %s23, 1
    %p151 = por %p149, %p150
    %p152 = scmp.ne.s32.totalorder %s143, %s144
    %p153 = scmp.eq.s32.totalorder %s23, 0
    %p154 = por %p152, %p153
    %p155 = scmp.ne.s32.totalorder %s143, %s144
    %p156 = scmp.eq.s32.totalorder %s24, 1
    %p157 = por %p155, %p156
    %p159 = scmp.ne.s32.totalorder %s144, %s158
    %p160 = scmp.eq.s32.totalorder %s24, 0
    %p161 = por %p159, %p160
    %s163 = sadd.s32 %s162, 1
    %p166 = scmp.eq.s32.totalorder %s18, 1
    %p167 = scmp.ne.s32.totalorder %s162, %s164
    %p168 = scmp.eq.s32.totalorder %s18, 0
    %p169 = por %p167, %p168
    %p170 = scmp.ne.s32.totalorder %s162, %s164
    %p171 = scmp.eq.s32.totalorder %s23, 1
    %p172 = por %p170, %p171
    %p173 = scmp.ne.s32.totalorder %s164, %s165
    %p174 = scmp.eq.s32.totalorder %s23, 0
    %p175 = por %p173, %p174
    %p176 = scmp.ne.s32.totalorder %s164, %s165
    %p177 = scmp.eq.s32.totalorder %s24, 1
    %p178 = por %p176, %p177
    %p180 = scmp.ne.s32.totalorder %s165, %s179
    %p181 = scmp.eq.s32.totalorder %s24, 0
    %p182 = por %p180, %p181
    %s184 = sadd.s32 %s183, 1
    %p187 = scmp.eq.s32.totalorder %s18, 1
    %p188 = scmp.ne.s32.totalorder %s183, %s185
    %p189 = scmp.eq.s32.totalorder %s18, 0
    %p190 = por %p188, %p189
    %p191 = scmp.ne.s32.totalorder %s183, %s185
    %p192 = scmp.eq.s32.totalorder %s23, 1
    %p193 = por %p191, %p192
    %p194 = scmp.ne.s32.totalorder %s185, %s186
    %p195 = scmp.eq.s32.totalorder %s23, 0
    %p196 = por %p194, %p195
    %p197 = scmp.ne.s32.totalorder %s185, %s186
    %p198 = scmp.eq.s32.totalorder %s24, 1
    %p199 = por %p197, %p198
    %p201 = scmp.ne.s32.totalorder %s186, %s200
    %p202 = scmp.eq.s32.totalorder %s24, 0
    %p203 = por %p201, %p202
    %s205 = sadd.s32 %s204, 1
    %p208 = scmp.eq.s32.totalorder %s18, 1
    %p209 = scmp.ne.s32.totalorder %s204, %s206
    %p210 = scmp.eq.s32.totalorder %s18, 0
    %p211 = por %p209, %p210
    %p212 = scmp.ne.s32.totalorder %s204, %s206
    %p213 = scmp.eq.s32.totalorder %s23, 1
    %p214 = por %p212, %p213
    %p215 = scmp.ne.s32.totalorder %s206, %s207
    %p216 = scmp.eq.s32.totalorder %s23, 0
    %p217 = por %p215, %p216
    %p218 = scmp.ne.s32.totalorder %s206, %s207
    %p219 = scmp.eq.s32.totalorder %s24, 1
    %p220 = por %p218, %p219
    %p222 = scmp.ne.s32.totalorder %s207, %s221
    %p223 = scmp.eq.s32.totalorder %s24, 0
    %p224 = por %p222, %p223
    %s226 = sadd.s32 %s225, 1
    %p229 = scmp.eq.s32.totalorder %s18, 1
    %p230 = scmp.ne.s32.totalorder %s225, %s227
    %p231 = scmp.eq.s32.totalorder %s18, 0
    %p232 = por %p230, %p231
    %p233 = scmp.ne.s32.totalorder %s225, %s227
    %p234 = scmp.eq.s32.totalorder %s23, 1
    %p235 = por %p233, %p234
    %p236 = scmp.ne.s32.totalorder %s227, %s228
    %p237 = scmp.eq.s32.totalorder %s23, 0
    %p238 = por %p236, %p237
    %p239 = scmp.ne.s32.totalorder %s227, %s228
    %p240 = scmp.eq.s32.totalorder %s24, 1
    %p241 = por %p239, %p240
    %p243 = scmp.ne.s32.totalorder %s228, %s242
    %p244 = scmp.eq.s32.totalorder %s24, 0
    %p245 = por %p243, %p244
    %s247 = sadd.s32 %s246, 1
    %p250 = scmp.eq.s32.totalorder %s18, 1
    %p251 = scmp.ne.s32.totalorder %s246, %s248
    %p252 = scmp.eq.s32.totalorder %s18, 0
    %p253 = por %p251, %p252
    %p254 = scmp.ne.s32.totalorder %s246, %s248
    %p255 = scmp.eq.s32.totalorder %s23, 1
    %p256 = por %p254, %p255
    %p257 = scmp.ne.s32.totalorder %s248, %s249
    %p258 = scmp.eq.s32.totalorder %s23, 0
    %p259 = por %p257, %p258
    %p260 = scmp.ne.s32.totalorder %s248, %s249
    %p261 = scmp.eq.s32.totalorder %s24, 1
    %p262 = por %p260, %p261
    %p264 = scmp.ne.s32.totalorder %s249, %s263
    %p265 = scmp.eq.s32.totalorder %s24, 0
    %p266 = por %p264, %p265
    %s268 = sadd.s32 %s267, 1
    %p271 = scmp.eq.s32.totalorder %s18, 1
    %p272 = scmp.ne.s32.totalorder %s267, %s269
    %p273 = scmp.eq.s32.totalorder %s18, 0
    %p274 = por %p272, %p273
    %p275 = scmp.ne.s32.totalorder %s267, %s269
    %p276 = scmp.eq.s32.totalorder %s23, 1
    %p277 = por %p275, %p276
    %p278 = scmp.ne.s32.totalorder %s269, %s270
    %p279 = scmp.eq.s32.totalorder %s23, 0
    %p280 = por %p278, %p279
    %p281 = scmp.ne.s32.totalorder %s269, %s270
    %p282 = scmp.eq.s32.totalorder %s24, 1
    %p283 = por %p281, %p282
    %p285 = scmp.ne.s32.totalorder %s270, %s284
    %p286 = scmp.eq.s32.totalorder %s24, 0
    %p287 = por %p285, %p286
    %s288 = ssub.s32 %s18, %s25
    %p289 = scmp.eq.s32.totalorder %s288, 0
    %s291 = sadd.s32 %s290, 1
    %s292 = scalar_select %p289, %s290, %s291
    %p295 = pneg %p289
    %p296 = scmp.eq.s32.totalorder %s18, 1
    %p297 = por %p295, %p296
    %p298 = scmp.ne.s32.totalorder %s290, %s293
    %p299 = scmp.eq.s32.totalorder %s18, 0
    %p300 = por %p298, %p299
    %p301 = scmp.ne.s32.totalorder %s290, %s293
    %p302 = scmp.eq.s32.totalorder %s23, 1
    %p303 = por %p301, %p302
    %p304 = scmp.ne.s32.totalorder %s293, %s294
    %p305 = scmp.eq.s32.totalorder %s23, 0
    %p306 = por %p304, %p305
    %p307 = scmp.ne.s32.totalorder %s293, %s294
    %p308 = scmp.eq.s32.totalorder %s24, 1
    %p309 = por %p307, %p308
    %p311 = scmp.ne.s32.totalorder %s294, %s310
    %p312 = scmp.eq.s32.totalorder %s24, 0
    %p313 = por %p311, %p312
    %p314 = scmp.le.s32.totalorder 1, %s18
    %p315 = scmp.lt.s32.totalorder %s18, 3
    %p316 = pnand %p314, %p315
    %p317 = pneg %p316
    // Predicated region
    $region9: #{bert_forward.4} parent=5 // pred_check
      _
    $region10: #{bert_forward.4} parent=5 // pred_check_branch
      %319 = sbr.rel (%p316) target = $region12
    $region11: #{bert_forward.4} parent=5 // pred_region
      %s320 = ssub.s32 %s18, 1
      // Predicated region
      $region13: #{bert_forward.4} parent=11 // pred_check
        %p321 = pneg %p91
      $region14: #{bert_forward.4} parent=11 // pred_check_branch
        %323 = sbr.rel (%p321) target = $region16
      $region15: #{bert_forward.4} parent=11 // pred_region
        _
      $region16: #{bert_forward.4} parent=11 // pred_fallthru
        _
      // Predicated region
      $region17: #{bert_forward.4} parent=11 // pred_check
        %p324 = pneg %p112
      $region18: #{bert_forward.4} parent=11 // pred_check_branch
        %326 = sbr.rel (%p324) target = $region20
      $region19: #{bert_forward.4} parent=11 // pred_region
        _
      $region20: #{bert_forward.4} parent=11 // pred_fallthru
        _
      // Predicated region
      $region21: #{bert_forward.4} parent=11 // pred_check
        %p327 = pneg %p133
      $region22: #{bert_forward.4} parent=11 // pred_check_branch
        %329 = sbr.rel (%p327) target = $region24
      $region23: #{bert_forward.4} parent=11 // pred_region
        _
      $region24: #{bert_forward.4} parent=11 // pred_fallthru
        _
      // Predicated region
      $region25: #{bert_forward.4} parent=11 // pred_check
        %p330 = pneg %p154
      $region26: #{bert_forward.4} parent=11 // pred_check_branch
        %332 = sbr.rel (%p330) target = $region28
      $region27: #{bert_forward.4} parent=11 // pred_region
        _
      $region28: #{bert_forward.4} parent=11 // pred_fallthru
        _
      // Predicated region
      $region29: #{bert_forward.4} parent=11 // pred_check
        %p333 = pneg %p175
      $region30: #{bert_forward.4} parent=11 // pred_check_branch
        %335 = sbr.rel (%p333) target = $region32
      $region31: #{bert_forward.4} parent=11 // pred_region
        _
      $region32: #{bert_forward.4} parent=11 // pred_fallthru
        _
      // Predicated region
      $region33: #{bert_forward.4} parent=11 // pred_check
        %p336 = pneg %p196
      $region34: #{bert_forward.4} parent=11 // pred_check_branch
        %338 = sbr.rel (%p336) target = $region36
      $region35: #{bert_forward.4} parent=11 // pred_region
        _
      $region36: #{bert_forward.4} parent=11 // pred_fallthru
        _
      // Predicated region
      $region37: #{bert_forward.4} parent=11 // pred_check
        %p339 = pneg %p217
      $region38: #{bert_forward.4} parent=11 // pred_check_branch
        %341 = sbr.rel (%p339) target = $region40
      $region39: #{bert_forward.4} parent=11 // pred_region
        _
      $region40: #{bert_forward.4} parent=11 // pred_fallthru
        _
      // Predicated region
      $region41: #{bert_forward.4} parent=11 // pred_check
        %p342 = pneg %p238
      $region42: #{bert_forward.4} parent=11 // pred_check_branch
        %344 = sbr.rel (%p342) target = $region44
      $region43: #{bert_forward.4} parent=11 // pred_region
        _
      $region44: #{bert_forward.4} parent=11 // pred_fallthru
        _
      // Predicated region
      $region45: #{bert_forward.4} parent=11 // pred_check
        %p345 = pneg %p259
      $region46: #{bert_forward.4} parent=11 // pred_check_branch
        %347 = sbr.rel (%p345) target = $region48
      $region47: #{bert_forward.4} parent=11 // pred_region
        _
      $region48: #{bert_forward.4} parent=11 // pred_fallthru
        _
      // Predicated region
      $region49: #{bert_forward.4} parent=11 // pred_check
        %p348 = pneg %p280
      $region50: #{bert_forward.4} parent=11 // pred_check_branch
        %350 = sbr.rel (%p348) target = $region52
      $region51: #{bert_forward.4} parent=11 // pred_region
        _
      $region52: #{bert_forward.4} parent=11 // pred_fallthru
        _
    $region12: #{bert_forward.4} parent=5 // pred_fallthru
      _
    %p351 = scmp.lt.s32.totalorder %s18, 2
    // Predicated region
    $region53: #{bert_forward.4} parent=5 // pred_check
      %p352 = pneg %p351
    $region54: #{bert_forward.4} parent=5 // pred_check_branch
      %354 = sbr.rel (%p352) target = $region56
    $region55: #{bert_forward.4} parent=5 // pred_region
      // Predicated region
      $region57: #{bert_forward.4} parent=55 // pred_check
        %p355 = pneg %p38
      $region58: #{bert_forward.4} parent=55 // pred_check_branch
        %357 = sbr.rel (%p355) target = $region60
      $region59: #{bert_forward.4} parent=55 // pred_region
        %p358 = scmp.lt.s32.totalorder %s18, 1
        %s359 = scalar_select %p358, %s18, 1
        %s360 = smul.addr %s359, 4
        %s361 = scalar_lea.vmem %s0, %s360
      $region60: #{bert_forward.4} parent=55 // pred_fallthru
        _
      // Predicated region
      $region61: #{bert_forward.4} parent=55 // pred_check
        %p362 = pneg %p64
      $region62: #{bert_forward.4} parent=55 // pred_check_branch
        %364 = sbr.rel (%p362) target = $region64
      $region63: #{bert_forward.4} parent=55 // pred_region
        %p365 = scmp.lt.s32.totalorder %s18, 1
        %s366 = scalar_select %p365, %s18, 1
        %s367 = scalar_lea.vmem %s1, %s366
      $region64: #{bert_forward.4} parent=55 // pred_fallthru
        _
    $region56: #{bert_forward.4} parent=5 // pred_fallthru
      _
    %p368 = scmp.le.s32.totalorder 1, %s18
    %p369 = scmp.lt.s32.totalorder %s18, 3
    %p370 = pnand %p368, %p369
    %p371 = pneg %p370
    // Predicated region
    $region65: #{bert_forward.4} parent=5 // pred_check
      _
    $region66: #{bert_forward.4} parent=5 // pred_check_branch
      %373 = sbr.rel (%p370) target = $region68
    $region67: #{bert_forward.4} parent=5 // pred_region
      %s374 = ssub.s32 %s18, 1
      %p375 = scmp.lt.s32.totalorder %s23, 1
      %s376 = scalar_select %p375, %s23, 1
      %s377 = smul.addr %s376, 4
      %s378 = scalar_lea.vmem %s0, %s377
      %p379 = pneg %p44
      %p380 = pneg %p41
      %p381 = scmp.lt.s32.totalorder %s23, 1
      %s382 = scalar_select %p381, %s23, 1
      %s383 = scalar_lea.vmem %s1, %s382
      %p384 = pneg %p70
      %p385 = pneg %p67
      %p386 = pneg %p91
      %p387 = pneg %p88
      %p388 = pneg %p112
      %p389 = pneg %p109
      %p390 = pneg %p133
      %p391 = pneg %p130
      %p392 = pneg %p154
      %p393 = pneg %p151
      %p394 = pneg %p175
      %p395 = pneg %p172
      %p396 = pneg %p196
      %p397 = pneg %p193
      %p398 = pneg %p217
      %p399 = pneg %p214
      %p400 = pneg %p238
      %p401 = pneg %p235
      %p402 = pneg %p259
      %p403 = pneg %p256
      %p404 = pneg %p280
      %p405 = pneg %p277
      %p406 = pneg %p306
      %p407 = pneg %p303
      %p408 = scmp.lt.s32.totalorder %s23, 1
      %s409 = scalar_select %p408, %s23, 1
      %s410 = smul.addr %s409, 4
      %s411 = scalar_lea.vmem %s12, %s410
      %p412 = scmp.lt.s32.totalorder %s23, 1
      %s413 = scalar_select %p412, %s23, 1
      %s414 = smul.addr %s413, 4
      %s415 = scalar_lea.vmem %s0, %s414
      %p416 = scmp.lt.s32.totalorder %s23, 1
      %s417 = scalar_select %p416, %s23, 1
      %s418 = scalar_lea.vmem %s1, %s417
      %p419 = scmp.lt.s32.totalorder %s23, 1
      %s420 = scalar_select %p419, %s23, 1
      %s421 = smul.addr %s420, 4
      %s422 = scalar_lea.vmem %s12, %s421
      %v424 = vld [vmem:[%s415] sm:$0xf]
      %v425 = vunpack.c.l.bf16 %v424
      %v426 = vld [vmem:[%s2] sm:$0xf]
      %v427 = vld [vmem:[%s2 + $0x4] sm:$0xf]
      %v428 = vld [vmem:[%s2 + $0x8] sm:$0xf]
      %v429 = vld [vmem:[%s2 + $0xc] sm:$0xf]
      %v430 = vld [vmem:[%s3] sm:$0x1]
      %v432 = vlaneseq
      %v433 = vshrl.u32 %v432, 7
      %v434 = vsub.s32 0, %v433
      %v435 = vrot.slane %v430, %v434
      %v441 = vunpack.c.l.b16 %v426
      %v442 = vunpack.c.l.b16 %v427
      %v443 = vunpack.c.l.b16 %v428
      %v444 = vunpack.c.l.b16 %v429
      %v445 = vpack.c.b16 %v442, %v441
      %v446 = vpack.c.b16 %v444, %v443
      %vm449 = vcmask 261120
      %v451 = vsel %vm449, %v424, 0
      %453 = vmatprep.subr.bf16.mxu0 0
      %454 = vmatpush1.bf16.msra.mxu0 0
      %455 = vmatprep.subr.bf16.mxu0 0
      %456 = vmatpush1.bf16.msra.mxu0 0
      %457 = vmatprep.subr.bf16.mxu0 0
      %458 = vmatpush1.bf16.msra.mxu0 0
      %459 = vmatprep.subr.bf16.mxu0 0
      %460 = vmatpush1.bf16.msra.mxu0 0
      %461 = vmatprep.subr.bf16.mxu0 0
      %462 = vmatpush1.bf16.msra.mxu0 0
      %463 = vmatprep.subr.bf16.mxu0 0
      %464 = vmatpush1.bf16.msra.mxu0 0
      %465 = vmatprep.subr.bf16.mxu0 0
      %466 = vmatpush1.bf16.msra.mxu0 %v446
      %467 = vmatprep.subr.bf16.mxu0 0
      %468 = vmatpush1.bf16.msra.mxu0 %v445
      %469 = vmatprep.subr.bf16.mxu0 0
      %470 = vmatpush2.bf16.msra.mxu0 0
      %471 = vmatprep.subr.bf16.mxu0 0
      %472 = vmatpush2.bf16.msra.mxu0 0
      %473 = vmatprep.subr.bf16.mxu0 0
      %474 = vmatpush2.bf16.msra.mxu0 0
      %475 = vmatprep.subr.bf16.mxu0 0
      %476 = vmatpush2.bf16.msra.mxu0 0
      %477 = vmatprep.subr.bf16.mxu0 0
      %478 = vmatpush2.bf16.msra.mxu0 0
      %479 = vmatprep.subr.bf16.mxu0 0
      %480 = vmatpush2.bf16.msra.mxu0 0
      %481 = vmatprep.subr.bf16.mxu0 0
      %482 = vmatpush2.bf16.msra.mxu0 0
      %483 = vmatprep.subr.bf16.mxu0 0
      %484 = vmatpush2.bf16.msra.mxu0 0
      %485 = vmatprep.mubr.bf16.mxu0 0
      %486 = vmatmul.mubr.bf16.gmra.mxu0 %v451
      %v487 = vpop.f32.mrf.mxu0
      %v488 = vadd.f32 %v435, %v487
      %v489 = vpop.f32.mrf.mxu0
      %v490 = vpop.f32.mrf.mxu0
      %v491 = vpop.f32.mrf.mxu0
      %492 = vdwg.mxu0
      %v493 = vld [vmem:[%s418] sm:$0x1]
      %vm494 = vcmp.ne.s32.totalorder %v493, 0
      %v495 = vpack.c.bf16 %v488, %v488
      %497 = vrot.lane.b32.xlu0 %v495, 96
      %v498 = vpop.permute.xlu0 %497
      %vm499 = vcmask 64512
      %v501 = vsel %vm499, %v495, 0
      %v504 = vsel %vm499, %v498, 0
      %506 = vmatprep.subr.bf16.mxu0 0
      %507 = vmatpush1.bf16.xpose.msra.mxu0 0
      %508 = vmatprep.subr.bf16.mxu0 0
      %509 = vmatpush1.bf16.xpose.msra.mxu0 0
      %510 = vmatprep.subr.bf16.mxu0 0
      %511 = vmatpush1.bf16.xpose.msra.mxu0 0
      %512 = vmatprep.subr.bf16.mxu0 0
      %513 = vmatpush1.bf16.xpose.msra.mxu0 0
      %514 = vmatprep.subr.bf16.mxu0 0
      %515 = vmatpush1.bf16.xpose.msra.mxu0 0
      %516 = vmatprep.subr.bf16.mxu0 0
      %517 = vmatpush1.bf16.xpose.msra.mxu0 0
      %518 = vmatprep.subr.bf16.mxu0 0
      %519 = vmatpush1.bf16.xpose.msra.mxu0 0
      %520 = vmatprep.subr.bf16.mxu0 0
      %521 = vmatpush1.bf16.xpose.msra.mxu0 %v504
      %522 = vmatprep.subr.bf16.mxu0 0
      %523 = vmatpush2.bf16.xpose.msra.mxu0 0
      %524 = vmatprep.subr.bf16.mxu0 0
      %525 = vmatpush2.bf16.xpose.msra.mxu0 0
      %526 = vmatprep.subr.bf16.mxu0 0
      %527 = vmatpush2.bf16.xpose.msra.mxu0 0
      %528 = vmatprep.subr.bf16.mxu0 0
      %529 = vmatpush2.bf16.xpose.msra.mxu0 0
      %530 = vmatprep.subr.bf16.mxu0 0
      %531 = vmatpush2.bf16.xpose.msra.mxu0 0
      %532 = vmatprep.subr.bf16.mxu0 0
      %533 = vmatpush2.bf16.xpose.msra.mxu0 0
      %534 = vmatprep.subr.bf16.mxu0 0
      %535 = vmatpush2.bf16.xpose.msra.mxu0 0
      %536 = vmatprep.subr.bf16.mxu0 0
      %537 = vmatpush2.bf16.xpose.msra.mxu0 0
      %538 = vmatprep.mubr.bf16.mxu0 0
      %539 = vmatmul.mubr.bf16.gmra.mxu0 %v501
      %v540 = vpop.f32.mrf.mxu0
      %v541 = vadd.f32 0.0, %v540
      %v542 = vpop.f32.mrf.mxu0
      %v543 = vpop.f32.mrf.mxu0
      %v544 = vpop.f32.mrf.mxu0
      %545 = vdwg.mxu0
      %v546 = vmul.f32 %v541, 0.35355338
      %v547 = vsel %vm494, 1, 0
      %v548 = vlaneseq
      %v549 = vshrl.u32 %v548, 7
      %v550 = vsub.s32 0, %v549
      %v551 = vrot.slane %v547, %v550
      %vm552 = vcmp.eq.s32.totalorder %v551, 1
      %v553 = vsel %vm552, -1e+09, %v546
      %v554 = vsel %vm499, %v553, -inf
      %555 = vmax.xlane.f32.xlu0 %v554
      %v556 = vpop.xlane.xlu0 %555
      %v557 = vsub.f32 %v553, %v556
      %v558 = vmul.f32 %v557, 1.442695
      %v559 = vpow.pop %v558
      %v560 = vsel %vm499, %v559, 0.0
      %561 = vadd.xlane.f32.xlu0 %v560
      %v562 = vpop.xlane.xlu0 %561
      %v563 = vrcp.pop %v562
      %v564 = vmul.f32 %v559, %v563
      %v565 = vpack.c.bf16 %v564, %v564
      %566 = vrot.lane.b32.xlu0 %v495, 64
      %v567 = vpop.permute.xlu0 %566
      %v569 = vsel %vm499, %v565, 0
      %vm571 = vcmask 1043456
      %v573 = vsel %vm571, %v567, 0
      %575 = vmatprep.subr.bf16.mxu0 0
      %576 = vmatpush1.bf16.msra.mxu0 0
      %577 = vmatprep.subr.bf16.mxu0 0
      %578 = vmatpush1.bf16.msra.mxu0 0
      %579 = vmatprep.subr.bf16.mxu0 0
      %580 = vmatpush1.bf16.msra.mxu0 0
      %581 = vmatprep.subr.bf16.mxu0 0
      %582 = vmatpush1.bf16.msra.mxu0 0
      %583 = vmatprep.subr.bf16.mxu0 0
      %584 = vmatpush1.bf16.msra.mxu0 0
      %585 = vmatprep.subr.bf16.mxu0 0
      %586 = vmatpush1.bf16.msra.mxu0 0
      %587 = vmatprep.subr.bf16.mxu0 0
      %588 = vmatpush1.bf16.msra.mxu0 0
      %589 = vmatprep.subr.bf16.mxu0 0
      %590 = vmatpush1.bf16.msra.mxu0 %v573
      %591 = vmatprep.subr.bf16.mxu0 0
      %592 = vmatpush2.bf16.msra.mxu0 0
      %593 = vmatprep.subr.bf16.mxu0 0
      %594 = vmatpush2.bf16.msra.mxu0 0
      %595 = vmatprep.subr.bf16.mxu0 0
      %596 = vmatpush2.bf16.msra.mxu0 0
      %597 = vmatprep.subr.bf16.mxu0 0
      %598 = vmatpush2.bf16.msra.mxu0 0
      %599 = vmatprep.subr.bf16.mxu0 0
      %600 = vmatpush2.bf16.msra.mxu0 0
      %601 = vmatprep.subr.bf16.mxu0 0
      %602 = vmatpush2.bf16.msra.mxu0 0
      %603 = vmatprep.subr.bf16.mxu0 0
      %604 = vmatpush2.bf16.msra.mxu0 0
      %605 = vmatprep.subr.bf16.mxu0 0
      %606 = vmatpush2.bf16.msra.mxu0 0
      %607 = vmatprep.mubr.bf16.mxu0 0
      %608 = vmatmul.mubr.bf16.gmra.mxu0 %v569
      %v609 = vpop.f32.mrf.mxu0
      %v610 = vadd.f32 0.0, %v609
      %v611 = vpop.f32.mrf.mxu0
      %v612 = vpop.f32.mrf.mxu0
      %v613 = vpop.f32.mrf.mxu0
      %614 = vdwg.mxu0
      %615 = vrot.lane.b32.xlu0 %v495, 120
      %v616 = vpop.permute.xlu0 %615
      %617 = vrot.lane.b32.xlu0 %v495, 88
      %v618 = vpop.permute.xlu0 %617
      %v620 = vsel %vm499, %v616, 0
      %v623 = vsel %vm499, %v618, 0
      %625 = vmatprep.subr.bf16.mxu0 0
      %626 = vmatpush1.bf16.xpose.msra.mxu0 0
      %627 = vmatprep.subr.bf16.mxu0 0
      %628 = vmatpush1.bf16.xpose.msra.mxu0 0
      %629 = vmatprep.subr.bf16.mxu0 0
      %630 = vmatpush1.bf16.xpose.msra.mxu0 0
      %631 = vmatprep.subr.bf16.mxu0 0
      %632 = vmatpush1.bf16.xpose.msra.mxu0 0
      %633 = vmatprep.subr.bf16.mxu0 0
      %634 = vmatpush1.bf16.xpose.msra.mxu0 0
      %635 = vmatprep.subr.bf16.mxu0 0
      %636 = vmatpush1.bf16.xpose.msra.mxu0 0
      %637 = vmatprep.subr.bf16.mxu0 0
      %638 = vmatpush1.bf16.xpose.msra.mxu0 0
      %639 = vmatprep.subr.bf16.mxu0 0
      %640 = vmatpush1.bf16.xpose.msra.mxu0 %v623
      %641 = vmatprep.subr.bf16.mxu0 0
      %642 = vmatpush2.bf16.xpose.msra.mxu0 0
      %643 = vmatprep.subr.bf16.mxu0 0
      %644 = vmatpush2.bf16.xpose.msra.mxu0 0
      %645 = vmatprep.subr.bf16.mxu0 0
      %646 = vmatpush2.bf16.xpose.msra.mxu0 0
      %647 = vmatprep.subr.bf16.mxu0 0
      %648 = vmatpush2.bf16.xpose.msra.mxu0 0
      %649 = vmatprep.subr.bf16.mxu0 0
      %650 = vmatpush2.bf16.xpose.msra.mxu0 0
      %651 = vmatprep.subr.bf16.mxu0 0
      %652 = vmatpush2.bf16.xpose.msra.mxu0 0
      %653 = vmatprep.subr.bf16.mxu0 0
      %654 = vmatpush2.bf16.xpose.msra.mxu0 0
      %655 = vmatprep.subr.bf16.mxu0 0
      %656 = vmatpush2.bf16.xpose.msra.mxu0 0
      %657 = vmatprep.mubr.bf16.mxu0 0
      %658 = vmatmul.mubr.bf16.gmra.mxu0 %v620
      %v659 = vpop.f32.mrf.mxu0
      %v660 = vadd.f32 0.0, %v659
      %v661 = vpop.f32.mrf.mxu0
      %v662 = vpop.f32.mrf.mxu0
      %v663 = vpop.f32.mrf.mxu0
      %664 = vdwg.mxu0
      %v665 = vmul.f32 %v660, 0.35355338
      %v666 = vsel %vm552, -1e+09, %v665
      %v667 = vsel %vm499, %v666, -inf
      %668 = vmax.xlane.f32.xlu0 %v667
      %v669 = vpop.xlane.xlu0 %668
      %v670 = vsub.f32 %v666, %v669
      %v671 = vmul.f32 %v670, 1.442695
      %v672 = vpow.pop %v671
      %v673 = vsel %vm499, %v672, 0.0
      %674 = vadd.xlane.f32.xlu0 %v673
      %v675 = vpop.xlane.xlu0 %674
      %v676 = vrcp.pop %v675
      %v677 = vmul.f32 %v672, %v676
      %v678 = vpack.c.bf16 %v677, %v677
      %679 = vrot.lane.b32.xlu0 %v495, 56
      %v680 = vpop.permute.xlu0 %679
      %v682 = vsel %vm499, %v678, 0
      %v685 = vsel %vm571, %v680, 0
      %687 = vmatprep.subr.bf16.mxu0 0
      %688 = vmatpush1.bf16.msra.mxu0 0
      %689 = vmatprep.subr.bf16.mxu0 0
      %690 = vmatpush1.bf16.msra.mxu0 0
      %691 = vmatprep.subr.bf16.mxu0 0
      %692 = vmatpush1.bf16.msra.mxu0 0
      %693 = vmatprep.subr.bf16.mxu0 0
      %694 = vmatpush1.bf16.msra.mxu0 0
      %695 = vmatprep.subr.bf16.mxu0 0
      %696 = vmatpush1.bf16.msra.mxu0 0
      %697 = vmatprep.subr.bf16.mxu0 0
      %698 = vmatpush1.bf16.msra.mxu0 0
      %699 = vmatprep.subr.bf16.mxu0 0
      %700 = vmatpush1.bf16.msra.mxu0 0
      %701 = vmatprep.subr.bf16.mxu0 0
      %702 = vmatpush1.bf16.msra.mxu0 %v685
      %703 = vmatprep.subr.bf16.mxu0 0
      %704 = vmatpush2.bf16.msra.mxu0 0
      %705 = vmatprep.subr.bf16.mxu0 0
      %706 = vmatpush2.bf16.msra.mxu0 0
      %707 = vmatprep.subr.bf16.mxu0 0
      %708 = vmatpush2.bf16.msra.mxu0 0
      %709 = vmatprep.subr.bf16.mxu0 0
      %710 = vmatpush2.bf16.msra.mxu0 0
      %711 = vmatprep.subr.bf16.mxu0 0
      %712 = vmatpush2.bf16.msra.mxu0 0
      %713 = vmatprep.subr.bf16.mxu0 0
      %714 = vmatpush2.bf16.msra.mxu0 0
      %715 = vmatprep.subr.bf16.mxu0 0
      %716 = vmatpush2.bf16.msra.mxu0 0
      %717 = vmatprep.subr.bf16.mxu0 0
      %718 = vmatpush2.bf16.msra.mxu0 0
      %719 = vmatprep.mubr.bf16.mxu0 0
      %720 = vmatmul.mubr.bf16.gmra.mxu0 %v682
      %v721 = vpop.f32.mrf.mxu0
      %v722 = vadd.f32 0.0, %v721
      %v723 = vpop.f32.mrf.mxu0
      %v724 = vpop.f32.mrf.mxu0
      %v725 = vpop.f32.mrf.mxu0
      %726 = vdwg.mxu0
      %727 = vrot.lane.b32.xlu0 %v495, 112
      %v728 = vpop.permute.xlu0 %727
      %729 = vrot.lane.b32.xlu0 %v495, 80
      %v730 = vpop.permute.xlu0 %729
      %v732 = vsel %vm499, %v728, 0
      %v735 = vsel %vm499, %v730, 0
      %737 = vmatprep.subr.bf16.mxu0 0
      %738 = vmatpush1.bf16.xpose.msra.mxu0 0
      %739 = vmatprep.subr.bf16.mxu0 0
      %740 = vmatpush1.bf16.xpose.msra.mxu0 0
      %741 = vmatprep.subr.bf16.mxu0 0
      %742 = vmatpush1.bf16.xpose.msra.mxu0 0
      %743 = vmatprep.subr.bf16.mxu0 0
      %744 = vmatpush1.bf16.xpose.msra.mxu0 0
      %745 = vmatprep.subr.bf16.mxu0 0
      %746 = vmatpush1.bf16.xpose.msra.mxu0 0
      %747 = vmatprep.subr.bf16.mxu0 0
      %748 = vmatpush1.bf16.xpose.msra.mxu0 0
      %749 = vmatprep.subr.bf16.mxu0 0
      %750 = vmatpush1.bf16.xpose.msra.mxu0 0
      %751 = vmatprep.subr.bf16.mxu0 0
      %752 = vmatpush1.bf16.xpose.msra.mxu0 %v735
      %753 = vmatprep.subr.bf16.mxu0 0
      %754 = vmatpush2.bf16.xpose.msra.mxu0 0
      %755 = vmatprep.subr.bf16.mxu0 0
      %756 = vmatpush2.bf16.xpose.msra.mxu0 0
      %757 = vmatprep.subr.bf16.mxu0 0
      %758 = vmatpush2.bf16.xpose.msra.mxu0 0
      %759 = vmatprep.subr.bf16.mxu0 0
      %760 = vmatpush2.bf16.xpose.msra.mxu0 0
      %761 = vmatprep.subr.bf16.mxu0 0
      %762 = vmatpush2.bf16.xpose.msra.mxu0 0
      %763 = vmatprep.subr.bf16.mxu0 0
      %764 = vmatpush2.bf16.xpose.msra.mxu0 0
      %765 = vmatprep.subr.bf16.mxu0 0
      %766 = vmatpush2.bf16.xpose.msra.mxu0 0
      %767 = vmatprep.subr.bf16.mxu0 0
      %768 = vmatpush2.bf16.xpose.msra.mxu0 0
      %769 = vmatprep.mubr.bf16.mxu0 0
      %770 = vmatmul.mubr.bf16.gmra.mxu0 %v732
      %v771 = vpop.f32.mrf.mxu0
      %v772 = vadd.f32 0.0, %v771
      %v773 = vpop.f32.mrf.mxu0
      %v774 = vpop.f32.mrf.mxu0
      %v775 = vpop.f32.mrf.mxu0
      %776 = vdwg.mxu0
      %v777 = vmul.f32 %v772, 0.35355338
      %v778 = vsel %vm552, -1e+09, %v777
      %v779 = vsel %vm499, %v778, -inf
      %780 = vmax.xlane.f32.xlu0 %v779
      %v781 = vpop.xlane.xlu0 %780
      %v782 = vsub.f32 %v778, %v781
      %v783 = vmul.f32 %v782, 1.442695
      %v784 = vpow.pop %v783
      %v785 = vsel %vm499, %v784, 0.0
      %786 = vadd.xlane.f32.xlu0 %v785
      %v787 = vpop.xlane.xlu0 %786
      %v788 = vrcp.pop %v787
      %v789 = vmul.f32 %v784, %v788
      %v790 = vpack.c.bf16 %v789, %v789
      %791 = vrot.lane.b32.xlu0 %v495, 48
      %v792 = vpop.permute.xlu0 %791
      %v794 = vsel %vm499, %v790, 0
      %v797 = vsel %vm571, %v792, 0
      %799 = vmatprep.subr.bf16.mxu0 0
      %800 = vmatpush1.bf16.msra.mxu0 0
      %801 = vmatprep.subr.bf16.mxu0 0
      %802 = vmatpush1.bf16.msra.mxu0 0
      %803 = vmatprep.subr.bf16.mxu0 0
      %804 = vmatpush1.bf16.msra.mxu0 0
      %805 = vmatprep.subr.bf16.mxu0 0
      %806 = vmatpush1.bf16.msra.mxu0 0
      %807 = vmatprep.subr.bf16.mxu0 0
      %808 = vmatpush1.bf16.msra.mxu0 0
      %809 = vmatprep.subr.bf16.mxu0 0
      %810 = vmatpush1.bf16.msra.mxu0 0
      %811 = vmatprep.subr.bf16.mxu0 0
      %812 = vmatpush1.bf16.msra.mxu0 0
      %813 = vmatprep.subr.bf16.mxu0 0
      %814 = vmatpush1.bf16.msra.mxu0 %v797
      %815 = vmatprep.subr.bf16.mxu0 0
      %816 = vmatpush2.bf16.msra.mxu0 0
      %817 = vmatprep.subr.bf16.mxu0 0
      %818 = vmatpush2.bf16.msra.mxu0 0
      %819 = vmatprep.subr.bf16.mxu0 0
      %820 = vmatpush2.bf16.msra.mxu0 0
      %821 = vmatprep.subr.bf16.mxu0 0
      %822 = vmatpush2.bf16.msra.mxu0 0
      %823 = vmatprep.subr.bf16.mxu0 0
      %824 = vmatpush2.bf16.msra.mxu0 0
      %825 = vmatprep.subr.bf16.mxu0 0
      %826 = vmatpush2.bf16.msra.mxu0 0
      %827 = vmatprep.subr.bf16.mxu0 0
      %828 = vmatpush2.bf16.msra.mxu0 0
      %829 = vmatprep.subr.bf16.mxu0 0
      %830 = vmatpush2.bf16.msra.mxu0 0
      %831 = vmatprep.mubr.bf16.mxu0 0
      %832 = vmatmul.mubr.bf16.gmra.mxu0 %v794
      %v833 = vpop.f32.mrf.mxu0
      %v834 = vadd.f32 0.0, %v833
      %v835 = vpop.f32.mrf.mxu0
      %v836 = vpop.f32.mrf.mxu0
      %v837 = vpop.f32.mrf.mxu0
      %838 = vdwg.mxu0
      %839 = vrot.lane.b32.xlu0 %v495, 104
      %v840 = vpop.permute.xlu0 %839
      %841 = vrot.lane.b32.xlu0 %v495, 72
      %v842 = vpop.permute.xlu0 %841
      %v844 = vsel %vm499, %v840, 0
      %v847 = vsel %vm499, %v842, 0
      %849 = vmatprep.subr.bf16.mxu0 0
      %850 = vmatpush1.bf16.xpose.msra.mxu0 0
      %851 = vmatprep.subr.bf16.mxu0 0
      %852 = vmatpush1.bf16.xpose.msra.mxu0 0
      %853 = vmatprep.subr.bf16.mxu0 0
      %854 = vmatpush1.bf16.xpose.msra.mxu0 0
      %855 = vmatprep.subr.bf16.mxu0 0
      %856 = vmatpush1.bf16.xpose.msra.mxu0 0
      %857 = vmatprep.subr.bf16.mxu0 0
      %858 = vmatpush1.bf16.xpose.msra.mxu0 0
      %859 = vmatprep.subr.bf16.mxu0 0
      %860 = vmatpush1.bf16.xpose.msra.mxu0 0
      %861 = vmatprep.subr.bf16.mxu0 0
      %862 = vmatpush1.bf16.xpose.msra.mxu0 0
      %863 = vmatprep.subr.bf16.mxu0 0
      %864 = vmatpush1.bf16.xpose.msra.mxu0 %v847
      %865 = vmatprep.subr.bf16.mxu0 0
      %866 = vmatpush2.bf16.xpose.msra.mxu0 0
      %867 = vmatprep.subr.bf16.mxu0 0
      %868 = vmatpush2.bf16.xpose.msra.mxu0 0
      %869 = vmatprep.subr.bf16.mxu0 0
      %870 = vmatpush2.bf16.xpose.msra.mxu0 0
      %871 = vmatprep.subr.bf16.mxu0 0
      %872 = vmatpush2.bf16.xpose.msra.mxu0 0
      %873 = vmatprep.subr.bf16.mxu0 0
      %874 = vmatpush2.bf16.xpose.msra.mxu0 0
      %875 = vmatprep.subr.bf16.mxu0 0
      %876 = vmatpush2.bf16.xpose.msra.mxu0 0
      %877 = vmatprep.subr.bf16.mxu0 0
      %878 = vmatpush2.bf16.xpose.msra.mxu0 0
      %879 = vmatprep.subr.bf16.mxu0 0
      %880 = vmatpush2.bf16.xpose.msra.mxu0 0
      %881 = vmatprep.mubr.bf16.mxu0 0
      %882 = vmatmul.mubr.bf16.gmra.mxu0 %v844
      %v883 = vpop.f32.mrf.mxu0
      %v884 = vadd.f32 0.0, %v883
      %v885 = vpop.f32.mrf.mxu0
      %v886 = vpop.f32.mrf.mxu0
      %v887 = vpop.f32.mrf.mxu0
      %888 = vdwg.mxu0
      %v889 = vmul.f32 %v884, 0.35355338
      %v890 = vsel %vm552, -1e+09, %v889
      %v891 = vsel %vm499, %v890, -inf
      %892 = vmax.xlane.f32.xlu0 %v891
      %v893 = vpop.xlane.xlu0 %892
      %v894 = vsub.f32 %v890, %v893
      %v895 = vmul.f32 %v894, 1.442695
      %v896 = vpow.pop %v895
      %v897 = vsel %vm499, %v896, 0.0
      %898 = vadd.xlane.f32.xlu0 %v897
      %v899 = vpop.xlane.xlu0 %898
      %v900 = vrcp.pop %v899
      %v901 = vmul.f32 %v896, %v900
      %v902 = vpack.c.bf16 %v901, %v901
      %903 = vrot.lane.b32.xlu0 %v495, 40
      %v904 = vpop.permute.xlu0 %903
      %v906 = vsel %vm499, %v902, 0
      %v909 = vsel %vm571, %v904, 0
      %911 = vmatprep.subr.bf16.mxu0 0
      %912 = vmatpush1.bf16.msra.mxu0 0
      %913 = vmatprep.subr.bf16.mxu0 0
      %914 = vmatpush1.bf16.msra.mxu0 0
      %915 = vmatprep.subr.bf16.mxu0 0
      %916 = vmatpush1.bf16.msra.mxu0 0
      %917 = vmatprep.subr.bf16.mxu0 0
      %918 = vmatpush1.bf16.msra.mxu0 0
      %919 = vmatprep.subr.bf16.mxu0 0
      %920 = vmatpush1.bf16.msra.mxu0 0
      %921 = vmatprep.subr.bf16.mxu0 0
      %922 = vmatpush1.bf16.msra.mxu0 0
      %923 = vmatprep.subr.bf16.mxu0 0
      %924 = vmatpush1.bf16.msra.mxu0 0
      %925 = vmatprep.subr.bf16.mxu0 0
      %926 = vmatpush1.bf16.msra.mxu0 %v909
      %927 = vmatprep.subr.bf16.mxu0 0
      %928 = vmatpush2.bf16.msra.mxu0 0
      %929 = vmatprep.subr.bf16.mxu0 0
      %930 = vmatpush2.bf16.msra.mxu0 0
      %931 = vmatprep.subr.bf16.mxu0 0
      %932 = vmatpush2.bf16.msra.mxu0 0
      %933 = vmatprep.subr.bf16.mxu0 0
      %934 = vmatpush2.bf16.msra.mxu0 0
      %935 = vmatprep.subr.bf16.mxu0 0
      %936 = vmatpush2.bf16.msra.mxu0 0
      %937 = vmatprep.subr.bf16.mxu0 0
      %938 = vmatpush2.bf16.msra.mxu0 0
      %939 = vmatprep.subr.bf16.mxu0 0
      %940 = vmatpush2.bf16.msra.mxu0 0
      %941 = vmatprep.subr.bf16.mxu0 0
      %942 = vmatpush2.bf16.msra.mxu0 0
      %943 = vmatprep.mubr.bf16.mxu0 0
      %944 = vmatmul.mubr.bf16.gmra.mxu0 %v906
      %v945 = vpop.f32.mrf.mxu0
      %v946 = vadd.f32 0.0, %v945
      %v947 = vpop.f32.mrf.mxu0
      %v948 = vpop.f32.mrf.mxu0
      %v949 = vpop.f32.mrf.mxu0
      %950 = vdwg.mxu0
      %952 = vrot.lane.b32.xlu0 %v722, 8
      %v953 = vpop.permute.xlu0 %952
      %956 = vrot.lane.b32.xlu0 %v834, 16
      %v957 = vpop.permute.xlu0 %956
      %960 = vrot.lane.b32.xlu0 %v946, 24
      %v961 = vpop.permute.xlu0 %960
      %v963 = vsel %vm499, %v610, %v953
      %vm964 = vcmask 130048
      %v965 = vsel %vm964, %v963, %v957
      %vm966 = vcmask 195584
      %v967 = vsel %vm966, %v965, %v961
      %v968 = vpack.c.bf16 %v967, %v967
      %v969 = vld [vmem:[%s4] sm:$0xf]
      %v970 = vld [vmem:[%s4 + $0x4] sm:$0xf]
      %v971 = vld [vmem:[%s4 + $0x8] sm:$0xf]
      %v972 = vld [vmem:[%s4 + $0xc] sm:$0xf]
      %v973 = vld [vmem:[%s5] sm:$0x1]
      %v975 = vlaneseq
      %v976 = vshrl.u32 %v975, 7
      %v977 = vsub.s32 0, %v976
      %v978 = vrot.slane %v973, %v977
      %v984 = vunpack.c.l.b16 %v969
      %v985 = vunpack.c.l.b16 %v970
      %v986 = vunpack.c.l.b16 %v971
      %v987 = vunpack.c.l.b16 %v972
      %v988 = vpack.c.b16 %v985, %v984
      %v989 = vpack.c.b16 %v987, %v986
      %v993 = vsel %vm449, %v968, 0
      %995 = vmatprep.subr.bf16.mxu0 0
      %996 = vmatpush1.bf16.msra.mxu0 0
      %997 = vmatprep.subr.bf16.mxu0 0
      %998 = vmatpush1.bf16.msra.mxu0 0
      %999 = vmatprep.subr.bf16.mxu0 0
      %1000 = vmatpush1.bf16.msra.mxu0 0
      %1001 = vmatprep.subr.bf16.mxu0 0
      %1002 = vmatpush1.bf16.msra.mxu0 0
      %1003 = vmatprep.subr.bf16.mxu0 0
      %1004 = vmatpush1.bf16.msra.mxu0 0
      %1005 = vmatprep.subr.bf16.mxu0 0
      %1006 = vmatpush1.bf16.msra.mxu0 0
      %1007 = vmatprep.subr.bf16.mxu0 0
      %1008 = vmatpush1.bf16.msra.mxu0 %v989
      %1009 = vmatprep.subr.bf16.mxu0 0
      %1010 = vmatpush1.bf16.msra.mxu0 %v988
      %1011 = vmatprep.subr.bf16.mxu0 0
      %1012 = vmatpush2.bf16.msra.mxu0 0
      %1013 = vmatprep.subr.bf16.mxu0 0
      %1014 = vmatpush2.bf16.msra.mxu0 0
      %1015 = vmatprep.subr.bf16.mxu0 0
      %1016 = vmatpush2.bf16.msra.mxu0 0
      %1017 = vmatprep.subr.bf16.mxu0 0
      %1018 = vmatpush2.bf16.msra.mxu0 0
      %1019 = vmatprep.subr.bf16.mxu0 0
      %1020 = vmatpush2.bf16.msra.mxu0 0
      %1021 = vmatprep.subr.bf16.mxu0 0
      %1022 = vmatpush2.bf16.msra.mxu0 0
      %1023 = vmatprep.subr.bf16.mxu0 0
      %1024 = vmatpush2.bf16.msra.mxu0 0
      %1025 = vmatprep.subr.bf16.mxu0 0
      %1026 = vmatpush2.bf16.msra.mxu0 0
      %1027 = vmatprep.mubr.bf16.mxu0 0
      %1028 = vmatmul.mubr.bf16.gmra.mxu0 %v993
      %v1029 = vpop.f32.mrf.mxu0
      %v1030 = vadd.f32 %v978, %v1029
      %v1031 = vpop.f32.mrf.mxu0
      %v1032 = vpop.f32.mrf.mxu0
      %v1033 = vpop.f32.mrf.mxu0
      %1034 = vdwg.mxu0
      %v1035 = vadd.f32 %v1030, %v425
      %v1036 = vld [vmem:[%s6] sm:$0x1]
      %v1037 = vld [vmem:[%s7] sm:$0x1]
      %v1038 = vsel %vm449, %v1035, 0.0
      %1039 = vadd.xlane.f32.xlu0 %v1038
      %v1040 = vpop.xlane.xlu0 %1039
      %v1041 = vmul.f32 %v1040, 0.03125
      %v1042 = vsub.f32 %v1035, %v1041
      %v1043 = vmul.f32 %v1042, %v1042
      %v1044 = vsel %vm449, %v1043, 0.0
      %1045 = vadd.xlane.f32.xlu0 %v1044
      %v1046 = vpop.xlane.xlu0 %1045
      %v1047 = vmul.f32 %v1046, 0.03125
      %v1048 = vadd.f32 %v1047, 1e-05
      %v1049 = vrsqrt.pop %v1048
      %v1050 = vmul.f32 %v1042, %v1049
      %v1052 = vlaneseq
      %v1053 = vshrl.u32 %v1052, 7
      %v1054 = vsub.s32 0, %v1053
      %v1055 = vrot.slane %v1036, %v1054
      %v1057 = vmul.f32 %v1050, %v1055
      %v1059 = vlaneseq
      %v1060 = vshrl.u32 %v1059, 7
      %v1061 = vsub.s32 0, %v1060
      %v1062 = vrot.slane %v1037, %v1061
      %v1064 = vadd.f32 %v1057, %v1062
      %v1065 = vpack.c.bf16 %v1064, %v1064
      %v1066 = vld [vmem:[%s8] sm:$0xf]
      %v1067 = vld [vmem:[%s8 + $0x4] sm:$0xf]
      %v1068 = vld [vmem:[%s8 + $0x8] sm:$0xf]
      %v1069 = vld [vmem:[%s8 + $0xc] sm:$0xf]
      %v1074 = vunpack.c.l.b16 %v1066
      %v1075 = vunpack.c.l.b16 %v1067
      %v1076 = vunpack.c.l.b16 %v1068
      %v1077 = vunpack.c.l.b16 %v1069
      %v1078 = vpack.c.b16 %v1075, %v1074
      %v1079 = vpack.c.b16 %v1077, %v1076
      %v1083 = vsel %vm449, %v1065, 0
      %1085 = vmatprep.subr.bf16.mxu0 0
      %1086 = vmatpush1.bf16.msra.mxu0 0
      %1087 = vmatprep.subr.bf16.mxu0 0
      %1088 = vmatpush1.bf16.msra.mxu0 0
      %1089 = vmatprep.subr.bf16.mxu0 0
      %1090 = vmatpush1.bf16.msra.mxu0 0
      %1091 = vmatprep.subr.bf16.mxu0 0
      %1092 = vmatpush1.bf16.msra.mxu0 0
      %1093 = vmatprep.subr.bf16.mxu0 0
      %1094 = vmatpush1.bf16.msra.mxu0 0
      %1095 = vmatprep.subr.bf16.mxu0 0
      %1096 = vmatpush1.bf16.msra.mxu0 0
      %1097 = vmatprep.subr.bf16.mxu0 0
      %1098 = vmatpush1.bf16.msra.mxu0 %v1079
      %1099 = vmatprep.subr.bf16.mxu0 0
      %1100 = vmatpush1.bf16.msra.mxu0 %v1078
      %1101 = vmatprep.subr.bf16.mxu0 0
      %1102 = vmatpush2.bf16.msra.mxu0 0
      %1103 = vmatprep.subr.bf16.mxu0 0
      %1104 = vmatpush2.bf16.msra.mxu0 0
      %1105 = vmatprep.subr.bf16.mxu0 0
      %1106 = vmatpush2.bf16.msra.mxu0 0
      %1107 = vmatprep.subr.bf16.mxu0 0
      %1108 = vmatpush2.bf16.msra.mxu0 0
      %1109 = vmatprep.subr.bf16.mxu0 0
      %1110 = vmatpush2.bf16.msra.mxu0 0
      %1111 = vmatprep.subr.bf16.mxu0 0
      %1112 = vmatpush2.bf16.msra.mxu0 0
      %1113 = vmatprep.subr.bf16.mxu0 0
      %1114 = vmatpush2.bf16.msra.mxu0 0
      %1115 = vmatprep.subr.bf16.mxu0 0
      %1116 = vmatpush2.bf16.msra.mxu0 0
      %1117 = vmatprep.mubr.bf16.mxu0 0
      %1118 = vmatmul.mubr.bf16.gmra.mxu0 %v1083
      %v1119 = vpop.f32.mrf.mxu0
      %v1120 = vadd.f32 0.0, %v1119
      %v1121 = vpop.f32.mrf.mxu0
      %v1122 = vpop.f32.mrf.mxu0
      %v1123 = vpop.f32.mrf.mxu0
      %1124 = vdwg.mxu0
      %v1125 = vmax.f32 %v1120, 0.0
      %v1126 = vpack.c.bf16 %v1125, %v1125
      %v1127 = vld [vmem:[%s9] sm:$0xf]
      %v1128 = vld [vmem:[%s9 + $0x4] sm:$0xf]
      %v1129 = vld [vmem:[%s9 + $0x8] sm:$0xf]
      %v1130 = vld [vmem:[%s9 + $0xc] sm:$0xf]
      %v1131 = vld [vmem:[%s9 + $0x10] sm:$0xf]
      %v1132 = vld [vmem:[%s9 + $0x14] sm:$0xf]
      %v1133 = vld [vmem:[%s9 + $0x18] sm:$0xf]
      %v1134 = vld [vmem:[%s9 + $0x1c] sm:$0xf]
      %v1143 = vunpack.c.l.b16 %v1127
      %v1144 = vunpack.c.l.b16 %v1128
      %v1145 = vunpack.c.l.b16 %v1129
      %v1146 = vunpack.c.l.b16 %v1130
      %v1147 = vunpack.c.l.b16 %v1131
      %v1148 = vunpack.c.l.b16 %v1132
      %v1149 = vunpack.c.l.b16 %v1133
      %v1150 = vunpack.c.l.b16 %v1134
      %v1151 = vpack.c.b16 %v1144, %v1143
      %v1152 = vpack.c.b16 %v1146, %v1145
      %v1153 = vpack.c.b16 %v1148, %v1147
      %v1154 = vpack.c.b16 %v1150, %v1149
      %vm1159 = vcmask 523264
      %v1161 = vsel %vm1159, %v1126, 0
      %1163 = vmatprep.subr.bf16.mxu0 0
      %1164 = vmatpush1.bf16.msra.mxu0 0
      %1165 = vmatprep.subr.bf16.mxu0 0
      %1166 = vmatpush1.bf16.msra.mxu0 0
      %1167 = vmatprep.subr.bf16.mxu0 0
      %1168 = vmatpush1.bf16.msra.mxu0 0
      %1169 = vmatprep.subr.bf16.mxu0 0
      %1170 = vmatpush1.bf16.msra.mxu0 0
      %1171 = vmatprep.subr.bf16.mxu0 0
      %1172 = vmatpush1.bf16.msra.mxu0 %v1154
      %1173 = vmatprep.subr.bf16.mxu0 0
      %1174 = vmatpush1.bf16.msra.mxu0 %v1153
      %1175 = vmatprep.subr.bf16.mxu0 0
      %1176 = vmatpush1.bf16.msra.mxu0 %v1152
      %1177 = vmatprep.subr.bf16.mxu0 0
      %1178 = vmatpush1.bf16.msra.mxu0 %v1151
      %1179 = vmatprep.subr.bf16.mxu0 0
      %1180 = vmatpush2.bf16.msra.mxu0 0
      %1181 = vmatprep.subr.bf16.mxu0 0
      %1182 = vmatpush2.bf16.msra.mxu0 0
      %1183 = vmatprep.subr.bf16.mxu0 0
      %1184 = vmatpush2.bf16.msra.mxu0 0
      %1185 = vmatprep.subr.bf16.mxu0 0
      %1186 = vmatpush2.bf16.msra.mxu0 0
      %1187 = vmatprep.subr.bf16.mxu0 0
      %1188 = vmatpush2.bf16.msra.mxu0 0
      %1189 = vmatprep.subr.bf16.mxu0 0
      %1190 = vmatpush2.bf16.msra.mxu0 0
      %1191 = vmatprep.subr.bf16.mxu0 0
      %1192 = vmatpush2.bf16.msra.mxu0 0
      %1193 = vmatprep.subr.bf16.mxu0 0
      %1194 = vmatpush2.bf16.msra.mxu0 0
      %1195 = vmatprep.mubr.bf16.mxu0 0
      %1196 = vmatmul.mubr.bf16.gmra.mxu0 %v1161
      %v1197 = vpop.f32.mrf.mxu0
      %v1198 = vadd.f32 %v1064, %v1197
      %v1199 = vpop.f32.mrf.mxu0
      %v1200 = vpop.f32.mrf.mxu0
      %v1201 = vpop.f32.mrf.mxu0
      %1202 = vdwg.mxu0
      %v1203 = vld [vmem:[%s10] sm:$0x1]
      %v1204 = vld [vmem:[%s11] sm:$0x1]
      %v1205 = vsel %vm449, %v1198, 0.0
      %1206 = vadd.xlane.f32.xlu0 %v1205
      %v1207 = vpop.xlane.xlu0 %1206
      %v1208 = vmul.f32 %v1207, 0.03125
      %v1209 = vsub.f32 %v1198, %v1208
      %v1210 = vmul.f32 %v1209, %v1209
      %v1211 = vsel %vm449, %v1210, 0.0
      %1212 = vadd.xlane.f32.xlu0 %v1211
      %v1213 = vpop.xlane.xlu0 %1212
      %v1214 = vmul.f32 %v1213, 0.03125
      %v1215 = vadd.f32 %v1214, 1e-05
      %v1216 = vrsqrt.pop %v1215
      %v1217 = vmul.f32 %v1209, %v1216
      %v1219 = vlaneseq
      %v1220 = vshrl.u32 %v1219, 7
      %v1221 = vsub.s32 0, %v1220
      %v1222 = vrot.slane %v1203, %v1221
      %v1224 = vmul.f32 %v1217, %v1222
      %v1226 = vlaneseq
      %v1227 = vshrl.u32 %v1226, 7
      %v1228 = vsub.s32 0, %v1227
      %v1229 = vrot.slane %v1204, %v1228
      %v1231 = vadd.f32 %v1224, %v1229
      %v1232 = vpack.c.bf16 %v1231, %v1231
      %vm1233 = vcmask 257024
      %1234 = vst.msk [vmem:[%s422] sm:$0xf] %vm1233, %v1232
      %p1235 = scmp.lt.s32.totalorder %s23, 1
      %s1236 = scalar_select %p1235, %s23, 1
      %s1237 = smul.addr %s1236, 4
      %s1238 = scalar_lea.vmem %s12, %s1237
      // Predicated region
      $region69: #{bert_forward.4} parent=67 // pred_check
        %p1239 = pneg %p303
      $region70: #{bert_forward.4} parent=67 // pred_check_branch
        %1241 = sbr.rel (%p1239) target = $region72
      $region71: #{bert_forward.4} parent=67 // pred_region
        _
      $region72: #{bert_forward.4} parent=67 // pred_fallthru
        _
    $region68: #{bert_forward.4} parent=5 // pred_fallthru
      _
    %p1242 = scmp.le.s32.totalorder 2, %s18
    // Predicated region
    $region73: #{bert_forward.4} parent=5 // pred_check
      %p1243 = pneg %p1242
    $region74: #{bert_forward.4} parent=5 // pred_check_branch
      %1245 = sbr.rel (%p1243) target = $region76
    $region75: #{bert_forward.4} parent=5 // pred_region
      %s1246 = ssub.s32 %s18, 2
      // Predicated region
      $region77: #{bert_forward.4} parent=75 // pred_check
        %p1247 = pneg %p309
      $region78: #{bert_forward.4} parent=75 // pred_check_branch
        %1249 = sbr.rel (%p1247) target = $region80
      $region79: #{bert_forward.4} parent=75 // pred_region
        %p1250 = scmp.lt.s32.totalorder %s24, 1
        %s1251 = scalar_select %p1250, %s24, 1
        %s1252 = smul.addr %s1251, 4
        %s1253 = scalar_lea.vmem %s12, %s1252
      $region80: #{bert_forward.4} parent=75 // pred_fallthru
        _
    $region76: #{bert_forward.4} parent=5 // pred_fallthru
      _
  $region6: #{bert_forward.4} parent=0 // loop_footer
    %s22 = sadd.s32 1, %s18
  $region7: #{bert_forward.4} parent=0 // loop_footer_branch
    %17 = sbr.rel target = $region3
  $region8: #{bert_forward.4} parent=0 // loop_exit
    _

</llo_original>
